<compile_context>
chip_gen: v7x
topology: tpu7x:2x2x1
jax: 0.10.0
libtpu: 0.0.40
codegen_flags: <defaults>
</compile_context>

<pallas_src>
import functools

import jax
import jax.numpy as jnp
import numpy as np
from jax.experimental import pallas as pl
from jax.experimental.pallas import tpu as pltpu


def crf_nll_kernel(feats_ref, trans_ref, labels_ref, out_ref,
                   alpha_ref, gold_ref, prev_oh_ref, *, start_label_id):
    """One (batch_block, T_chunk) tile of the CRF forward / gold-score pass."""
    c = pl.program_id(1)
    n_chunks = pl.num_programs(1)

    feats = feats_ref[...].astype(jnp.float32)          # (Bb, Tc, L)
    trans = trans_ref[...].astype(jnp.float32)          # (L, L)
    labels = labels_ref[...]                            # (Bb, Tc, 1) int32
    Bb, Tc, L = feats.shape

    # One-hot built in-kernel (no f32 one-hot HBM traffic).
    lane_iota = jax.lax.broadcasted_iota(jnp.int32, (Bb, Tc, L), 2)
    oh = (labels == lane_iota).astype(jnp.float32)      # (Bb, Tc, L)

    @pl.when(c == 0)
    def _init():
        init_iota = jax.lax.broadcasted_iota(jnp.int32, (Bb, L), 1)
        alpha_ref[...] = jnp.where(init_iota == start_label_id,
                                   jnp.float32(0.0), jnp.float32(-10000.0))
        gold_ref[...] = jnp.zeros_like(gold_ref)
        prev_oh_ref[...] = jnp.zeros_like(prev_oh_ref)

    # ---------------- alpha recursion over this chunk ----------------
    trans_b = trans[None, :, :]                          # hoisted once per chunk
    log_alpha = alpha_ref[...]                           # (Bb, L)
    for s in range(Tc):                                  # bounded unroll (chunk)
        scores = trans_b + log_alpha[:, None, :]         # (Bb, L, L)
        m = jnp.max(scores, axis=-1)                     # (Bb, L)
        lse = m + jnp.log(jnp.sum(jnp.exp(scores - m[:, :, None]), axis=-1))
        new_alpha = lse + feats[:, s, :]                 # (Bb, L)
        if s == 0:
            # Global t == 0 happens only on the first chunk: no update there
            # (the reference recursion starts at t = 1).
            log_alpha = jnp.where(c > 0, new_alpha, log_alpha)
        else:
            log_alpha = new_alpha
    alpha_ref[...] = log_alpha

    # -------- gold-path score: one batched matmul per chunk --------
    oh_flat = oh.reshape(Bb * Tc, L)
    A = jnp.dot(oh_flat, trans, preferred_element_type=jnp.float32)
    A = A.reshape(Bb, Tc, L)                             # A[b,s,j] = trans[y_s, j]

    # transitions fully inside this chunk: sum_s trans[y_s, y_{s-1}], s >= 1
    inner = jnp.sum(A[:, 1:, :] * oh[:, :-1, :], axis=2)          # (Bb, Tc-1)
    inner = jnp.sum(inner, axis=1, keepdims=True)                 # (Bb, 1)

    # boundary transition into this chunk (uses carried one-hot of prev chunk)
    bnd = jnp.sum(A[:, 0, :] * prev_oh_ref[...], axis=1, keepdims=True)
    bnd = jnp.where(c > 0, bnd, jnp.zeros_like(bnd))              # (Bb, 1)

    # emission scores (exclude global t == 0, as in the reference)
    emit = jnp.sum(feats * oh, axis=2)                            # (Bb, Tc)
    step_iota = jax.lax.broadcasted_iota(jnp.int32, (Bb, Tc), 1)
    emit = jnp.where(jnp.logical_and(c == 0, step_iota == 0),
                     jnp.float32(0.0), emit)
    emit = jnp.sum(emit, axis=1, keepdims=True)                   # (Bb, 1)

    gold_new = gold_ref[...] + inner + bnd + emit
    gold_ref[...] = gold_new
    prev_oh_ref[...] = oh[:, -1, :]

    # ---------------- finalize on the last chunk ----------------
    @pl.when(c == n_chunks - 1)
    def _finalize():
        m_fin = jnp.max(log_alpha, axis=-1, keepdims=True)        # (Bb, 1)
        fwd = m_fin + jnp.log(jnp.sum(jnp.exp(log_alpha - m_fin),
                                      axis=-1, keepdims=True))    # (Bb, 1)
        out_ref[...] = fwd - gold_new


def crf_neg_log_likelihood(feats, label_ids, transitions, start_label_id,
                           *, b_block=None, t_chunk=None):
    """Pallas-backed equivalent of CRF._neg_log_likelihood (training forward)."""
    B, T, L = feats.shape
    if b_block is None:
        b_block = B
    if t_chunk is None:
        t_chunk = T
        for cand in (128, 64, 32, 16, 8):          # biggest valid divisor chunk
            if cand < T and T % cand == 0:
                t_chunk = cand
                break
    assert B % b_block == 0 and (b_block == B or b_block % 8 == 0)
    assert T % t_chunk == 0 and t_chunk >= 2
    assert t_chunk == T or t_chunk % 8 == 0

    labels3 = label_ids.astype(jnp.int32).reshape(B, T, 1)
    grid = (B // b_block, T // t_chunk)
    kernel = functools.partial(crf_nll_kernel, start_label_id=start_label_id)

    per_seq = pl.pallas_call(
        kernel,
        grid=grid,
        in_specs=[
            pl.BlockSpec((b_block, t_chunk, L), lambda b, c: (b, c, 0)),
            pl.BlockSpec((L, L), lambda b, c: (0, 0)),
            pl.BlockSpec((b_block, t_chunk, 1), lambda b, c: (b, c, 0)),
        ],
        out_specs=pl.BlockSpec((b_block, 1), lambda b, c: (b, 0)),
        out_shape=jax.ShapeDtypeStruct((B, 1), jnp.float32),
        scratch_shapes=[
            pltpu.VMEM((b_block, L), jnp.float32),   # log_alpha carry
            pltpu.VMEM((b_block, 1), jnp.float32),   # gold-score accumulator
            pltpu.VMEM((b_block, L), jnp.float32),   # previous-step one-hot
        ],
        compiler_params=pltpu.CompilerParams(
            dimension_semantics=("parallel", "arbitrary")),
    )(feats, transitions, labels3)
    return jnp.mean(per_seq)


def _reference_nll(feats, label_ids, trans, start_label_id):
    """Pure-JAX reference mirroring the PyTorch code."""
    B, T, L = feats.shape
    log_alpha = jnp.full((B, L), -10000.0, jnp.float32)
    log_alpha = log_alpha.at[:, start_label_id].set(0.0)
    for t in range(1, T):
        scores = trans[None, :, :] + log_alpha[:, None, :]
        log_alpha = jax.scipy.special.logsumexp(scores, axis=-1) + feats[:, t]
    fwd = jax.scipy.special.logsumexp(log_alpha, axis=-1)

    gold = jnp.zeros((B,), jnp.float32)
    batch_idx = jnp.arange(B)
    for t in range(1, T):
        gold = gold + trans[label_ids[:, t], label_ids[:, t - 1]] \
                    + feats[batch_idx, t, label_ids[:, t]]
    return jnp.mean(fwd - gold)


if __name__ == "__main__":
    # Small, deterministic configuration consistent with the module.
    num_labels = 8
    start_label_id = 0
    stop_label_id = 7
    batch, seq_len = 2, 16          # T=16 exercises two T-chunks (chunk = 8)

    key = jax.random.PRNGKey(0)
    k_trans, k_feats, k_labels = jax.random.split(key, 3)

    # Deterministic parameter init mirroring CRF.__init__.
    transitions = jax.random.normal(k_trans, (num_labels, num_labels), jnp.float32)
    transitions = transitions.at[start_label_id, :].set(-10000.0)
    transitions = transitions.at[:, stop_label_id].set(-10000.0)

    feats = jax.random.normal(k_feats, (batch, seq_len, num_labels), jnp.float32)
    label_ids = jax.random.randint(k_labels, (batch, seq_len), 0, num_labels)

    nll = crf_neg_log_likelihood(feats, label_ids, transitions, start_label_id)
    nll = jax.block_until_ready(nll)

    ref = _reference_nll(feats, label_ids, transitions, start_label_id)
    ref = jax.block_until_ready(ref)

    np.testing.assert_allclose(np.asarray(nll), np.asarray(ref),
                               rtol=1e-4, atol=1e-3)
    print("KERNEL_OK")
</pallas_src>

<mosaic_0001>
module attributes {stable_mosaic.version = 11 : i64} {
  func.func @crf_nll_kernel(%arg0: i32, %arg1: i32, %arg2: memref<2x8x8xf32, #tpu.memory_space<vmem>>, %arg3: memref<8x8xf32, #tpu.memory_space<vmem>>, %arg4: memref<2x8x1xi32, #tpu.memory_space<vmem>>, %arg5: memref<2x1xf32, #tpu.memory_space<vmem>>, %arg6: memref<2x8xf32, #tpu.memory_space<vmem>>, %arg7: memref<2x1xf32, #tpu.memory_space<vmem>>, %arg8: memref<2x8xf32, #tpu.memory_space<vmem>>) attributes {dimension_semantics = [#tpu.dimension_semantics<parallel>, #tpu.dimension_semantics<arbitrary>], iteration_bounds = array<i64: 1, 2>, scalar_prefetch = 0 : i64, scratch_operands = 3 : i64, tpu.core_type = #tpu.core_type<tc>, window_params = [{transform_indices = @transform_0, window_bounds = array<i64: 2, 8, 8>}, {pipeline_mode = #tpu.pipeline_mode<synchronous>, transform_indices = @transform_1, window_bounds = array<i64: 8, 8>}, {transform_indices = @transform_2, window_bounds = array<i64: 2, 8, 1>}, {transform_indices = @transform_3, window_bounds = array<i64: 2, 1>}]} {
    %c0 = arith.constant 0 : index
    %c0_0 = arith.constant 0 : index
    %c0_1 = arith.constant 0 : index
    %0 = vector.load %arg2[%c0, %c0_0, %c0_1] : memref<2x8x8xf32, #tpu.memory_space<vmem>>, vector<2x8x8xf32>
    %c0_2 = arith.constant 0 : index
    %c0_3 = arith.constant 0 : index
    %1 = vector.load %arg3[%c0_2, %c0_3] : memref<8x8xf32, #tpu.memory_space<vmem>>, vector<8x8xf32>
    %c0_4 = arith.constant 0 : index
    %c0_5 = arith.constant 0 : index
    %c0_6 = arith.constant 0 : index
    %2 = vector.load %arg4[%c0_4, %c0_5, %c0_6] : memref<2x8x1xi32, #tpu.memory_space<vmem>>, vector<2x8x1xi32>
    %3 = tpu.iota {dimensions = array<i32: 2>} : vector<2x8x8xi32>
    %4 = vector.broadcast %2 : vector<2x8x1xi32> to vector<2x8x8xi32>
    %5 = arith.cmpi eq, %4, %3 : vector<2x8x8xi32>
    %6 = arith.extui %5 : vector<2x8x8xi1> to vector<2x8x8xi32>
    %7 = arith.sitofp %6 : vector<2x8x8xi32> to vector<2x8x8xf32>
    %c0_i32 = arith.constant 0 : i32
    %8 = arith.cmpi eq, %arg1, %c0_i32 : i32
    %9 = arith.extui %8 : i1 to i32
    %c0_i32_7 = arith.constant 0 : i32
    %10 = arith.cmpi ne, %9, %c0_i32_7 : i32
    scf.if %10 {
      %177 = tpu.iota {dimensions = array<i32: 1>} : vector<2x8xi32>
      %c0_i32_48 = arith.constant 0 : i32
      %178 = vector.broadcast %c0_i32_48 : i32 to vector<2x8xi32>
      %179 = arith.cmpi eq, %177, %178 : vector<2x8xi32>
      %cst_49 = arith.constant 0.000000e+00 : f32
      %cst_50 = arith.constant -1.000000e+04 : f32
      %180 = vector.broadcast %cst_49 : f32 to vector<2x8xf32>
      %181 = vector.broadcast %cst_50 : f32 to vector<2x8xf32>
      %182 = arith.select %179, %180, %181 : vector<2x8xi1>, vector<2x8xf32>
      %c0_51 = arith.constant 0 : index
      %c0_52 = arith.constant 0 : index
      %183 = vector.load %arg6[%c0_51, %c0_52] : memref<2x8xf32, #tpu.memory_space<vmem>>, vector<2x8xf32>
      tpu.vector_store %arg6[%c0_51, %c0_52], %182 {strides = array<i32>} : memref<2x8xf32, #tpu.memory_space<vmem>>, vector<2x8xf32>,
      %cst_53 = arith.constant 0.000000e+00 : f32
      %184 = vector.broadcast %cst_53 : f32 to vector<2x1xf32>
      %c0_54 = arith.constant 0 : index
      %c0_55 = arith.constant 0 : index
      %185 = vector.load %arg7[%c0_54, %c0_55] : memref<2x1xf32, #tpu.memory_space<vmem>>, vector<2x1xf32>
      tpu.vector_store %arg7[%c0_54, %c0_55], %184 {strides = array<i32>} : memref<2x1xf32, #tpu.memory_space<vmem>>, vector<2x1xf32>,
      %cst_56 = arith.constant 0.000000e+00 : f32
      %186 = vector.broadcast %cst_56 : f32 to vector<2x8xf32>
      %c0_57 = arith.constant 0 : index
      %c0_58 = arith.constant 0 : index
      %187 = vector.load %arg8[%c0_57, %c0_58] : memref<2x8xf32, #tpu.memory_space<vmem>>, vector<2x8xf32>
      tpu.vector_store %arg8[%c0_57, %c0_58], %186 {strides = array<i32>} : memref<2x8xf32, #tpu.memory_space<vmem>>, vector<2x8xf32>,
    } else {
    }
    %11 = vector.shape_cast %1 : vector<8x8xf32> to vector<1x8x8xf32>
    %c0_8 = arith.constant 0 : index
    %c0_9 = arith.constant 0 : index
    %12 = vector.load %arg6[%c0_8, %c0_9] : memref<2x8xf32, #tpu.memory_space<vmem>>, vector<2x8xf32>
    %13 = vector.shape_cast %12 : vector<2x8xf32> to vector<2x1x8xf32>
    %14 = vector.broadcast %11 : vector<1x8x8xf32> to vector<2x8x8xf32>
    %15 = vector.broadcast %13 : vector<2x1x8xf32> to vector<2x8x8xf32>
    %16 = arith.addf %14, %15 : vector<2x8x8xf32>
    %cst = arith.constant dense<0xFF800000> : vector<2x8xf32>
    %17 = vector.multi_reduction <maximumf>, %16, %cst [2] : vector<2x8x8xf32> to vector<2x8xf32>
    %18 = vector.shape_cast %17 : vector<2x8xf32> to vector<2x8x1xf32>
    %19 = vector.broadcast %18 : vector<2x8x1xf32> to vector<2x8x8xf32>
    %20 = arith.subf %16, %19 : vector<2x8x8xf32>
    %21 = math.exp %20 : vector<2x8x8xf32>
    %cst_10 = arith.constant dense<0.000000e+00> : vector<2x8xf32>
    %22 = vector.multi_reduction <add>, %21, %cst_10 [2] : vector<2x8x8xf32> to vector<2x8xf32>
    %23 = math.log %22 : vector<2x8xf32>
    %24 = arith.addf %17, %23 : vector<2x8xf32>
    %25 = vector.extract_strided_slice %0 {offsets = [0, 0, 0], sizes = [2, 1, 8], strides = [1, 1, 1]} : vector<2x8x8xf32> to vector<2x1x8xf32>
    %26 = vector.shape_cast %25 : vector<2x1x8xf32> to vector<2x8xf32>
    %27 = arith.addf %24, %26 : vector<2x8xf32>
    %c0_i32_11 = arith.constant 0 : i32
    %28 = arith.cmpi sgt, %arg1, %c0_i32_11 : i32
    %29 = arith.select %28, %27, %12 : vector<2x8xf32>
    %30 = vector.shape_cast %29 : vector<2x8xf32> to vector<2x1x8xf32>
    %31 = vector.broadcast %11 : vector<1x8x8xf32> to vector<2x8x8xf32>
    %32 = vector.broadcast %30 : vector<2x1x8xf32> to vector<2x8x8xf32>
    %33 = arith.addf %31, %32 : vector<2x8x8xf32>
    %cst_12 = arith.constant dense<0xFF800000> : vector<2x8xf32>
    %34 = vector.multi_reduction <maximumf>, %33, %cst_12 [2] : vector<2x8x8xf32> to vector<2x8xf32>
    %35 = vector.shape_cast %34 : vector<2x8xf32> to vector<2x8x1xf32>
    %36 = vector.broadcast %35 : vector<2x8x1xf32> to vector<2x8x8xf32>
    %37 = arith.subf %33, %36 : vector<2x8x8xf32>
    %38 = math.exp %37 : vector<2x8x8xf32>
    %cst_13 = arith.constant dense<0.000000e+00> : vector<2x8xf32>
    %39 = vector.multi_reduction <add>, %38, %cst_13 [2] : vector<2x8x8xf32> to vector<2x8xf32>
    %40 = math.log %39 : vector<2x8xf32>
    %41 = arith.addf %34, %40 : vector<2x8xf32>
    %42 = vector.extract_strided_slice %0 {offsets = [0, 1, 0], sizes = [2, 1, 8], strides = [1, 1, 1]} : vector<2x8x8xf32> to vector<2x1x8xf32>
    %43 = vector.shape_cast %42 : vector<2x1x8xf32> to vector<2x8xf32>
    %44 = arith.addf %41, %43 : vector<2x8xf32>
    %45 = vector.shape_cast %44 : vector<2x8xf32> to vector<2x1x8xf32>
    %46 = vector.broadcast %11 : vector<1x8x8xf32> to vector<2x8x8xf32>
    %47 = vector.broadcast %45 : vector<2x1x8xf32> to vector<2x8x8xf32>
    %48 = arith.addf %46, %47 : vector<2x8x8xf32>
    %cst_14 = arith.constant dense<0xFF800000> : vector<2x8xf32>
    %49 = vector.multi_reduction <maximumf>, %48, %cst_14 [2] : vector<2x8x8xf32> to vector<2x8xf32>
    %50 = vector.shape_cast %49 : vector<2x8xf32> to vector<2x8x1xf32>
    %51 = vector.broadcast %50 : vector<2x8x1xf32> to vector<2x8x8xf32>
    %52 = arith.subf %48, %51 : vector<2x8x8xf32>
    %53 = math.exp %52 : vector<2x8x8xf32>
    %cst_15 = arith.constant dense<0.000000e+00> : vector<2x8xf32>
    %54 = vector.multi_reduction <add>, %53, %cst_15 [2] : vector<2x8x8xf32> to vector<2x8xf32>
    %55 = math.log %54 : vector<2x8xf32>
    %56 = arith.addf %49, %55 : vector<2x8xf32>
    %57 = vector.extract_strided_slice %0 {offsets = [0, 2, 0], sizes = [2, 1, 8], strides = [1, 1, 1]} : vector<2x8x8xf32> to vector<2x1x8xf32>
    %58 = vector.shape_cast %57 : vector<2x1x8xf32> to vector<2x8xf32>
    %59 = arith.addf %56, %58 : vector<2x8xf32>
    %60 = vector.shape_cast %59 : vector<2x8xf32> to vector<2x1x8xf32>
    %61 = vector.broadcast %11 : vector<1x8x8xf32> to vector<2x8x8xf32>
    %62 = vector.broadcast %60 : vector<2x1x8xf32> to vector<2x8x8xf32>
    %63 = arith.addf %61, %62 : vector<2x8x8xf32>
    %cst_16 = arith.constant dense<0xFF800000> : vector<2x8xf32>
    %64 = vector.multi_reduction <maximumf>, %63, %cst_16 [2] : vector<2x8x8xf32> to vector<2x8xf32>
    %65 = vector.shape_cast %64 : vector<2x8xf32> to vector<2x8x1xf32>
    %66 = vector.broadcast %65 : vector<2x8x1xf32> to vector<2x8x8xf32>
    %67 = arith.subf %63, %66 : vector<2x8x8xf32>
    %68 = math.exp %67 : vector<2x8x8xf32>
    %cst_17 = arith.constant dense<0.000000e+00> : vector<2x8xf32>
    %69 = vector.multi_reduction <add>, %68, %cst_17 [2] : vector<2x8x8xf32> to vector<2x8xf32>
    %70 = math.log %69 : vector<2x8xf32>
    %71 = arith.addf %64, %70 : vector<2x8xf32>
    %72 = vector.extract_strided_slice %0 {offsets = [0, 3, 0], sizes = [2, 1, 8], strides = [1, 1, 1]} : vector<2x8x8xf32> to vector<2x1x8xf32>
    %73 = vector.shape_cast %72 : vector<2x1x8xf32> to vector<2x8xf32>
    %74 = arith.addf %71, %73 : vector<2x8xf32>
    %75 = vector.shape_cast %74 : vector<2x8xf32> to vector<2x1x8xf32>
    %76 = vector.broadcast %11 : vector<1x8x8xf32> to vector<2x8x8xf32>
    %77 = vector.broadcast %75 : vector<2x1x8xf32> to vector<2x8x8xf32>
    %78 = arith.addf %76, %77 : vector<2x8x8xf32>
    %cst_18 = arith.constant dense<0xFF800000> : vector<2x8xf32>
    %79 = vector.multi_reduction <maximumf>, %78, %cst_18 [2] : vector<2x8x8xf32> to vector<2x8xf32>
    %80 = vector.shape_cast %79 : vector<2x8xf32> to vector<2x8x1xf32>
    %81 = vector.broadcast %80 : vector<2x8x1xf32> to vector<2x8x8xf32>
    %82 = arith.subf %78, %81 : vector<2x8x8xf32>
    %83 = math.exp %82 : vector<2x8x8xf32>
    %cst_19 = arith.constant dense<0.000000e+00> : vector<2x8xf32>
    %84 = vector.multi_reduction <add>, %83, %cst_19 [2] : vector<2x8x8xf32> to vector<2x8xf32>
    %85 = math.log %84 : vector<2x8xf32>
    %86 = arith.addf %79, %85 : vector<2x8xf32>
    %87 = vector.extract_strided_slice %0 {offsets = [0, 4, 0], sizes = [2, 1, 8], strides = [1, 1, 1]} : vector<2x8x8xf32> to vector<2x1x8xf32>
    %88 = vector.shape_cast %87 : vector<2x1x8xf32> to vector<2x8xf32>
    %89 = arith.addf %86, %88 : vector<2x8xf32>
    %90 = vector.shape_cast %89 : vector<2x8xf32> to vector<2x1x8xf32>
    %91 = vector.broadcast %11 : vector<1x8x8xf32> to vector<2x8x8xf32>
    %92 = vector.broadcast %90 : vector<2x1x8xf32> to vector<2x8x8xf32>
    %93 = arith.addf %91, %92 : vector<2x8x8xf32>
    %cst_20 = arith.constant dense<0xFF800000> : vector<2x8xf32>
    %94 = vector.multi_reduction <maximumf>, %93, %cst_20 [2] : vector<2x8x8xf32> to vector<2x8xf32>
    %95 = vector.shape_cast %94 : vector<2x8xf32> to vector<2x8x1xf32>
    %96 = vector.broadcast %95 : vector<2x8x1xf32> to vector<2x8x8xf32>
    %97 = arith.subf %93, %96 : vector<2x8x8xf32>
    %98 = math.exp %97 : vector<2x8x8xf32>
    %cst_21 = arith.constant dense<0.000000e+00> : vector<2x8xf32>
    %99 = vector.multi_reduction <add>, %98, %cst_21 [2] : vector<2x8x8xf32> to vector<2x8xf32>
    %100 = math.log %99 : vector<2x8xf32>
    %101 = arith.addf %94, %100 : vector<2x8xf32>
    %102 = vector.extract_strided_slice %0 {offsets = [0, 5, 0], sizes = [2, 1, 8], strides = [1, 1, 1]} : vector<2x8x8xf32> to vector<2x1x8xf32>
    %103 = vector.shape_cast %102 : vector<2x1x8xf32> to vector<2x8xf32>
    %104 = arith.addf %101, %103 : vector<2x8xf32>
    %105 = vector.shape_cast %104 : vector<2x8xf32> to vector<2x1x8xf32>
    %106 = vector.broadcast %11 : vector<1x8x8xf32> to vector<2x8x8xf32>
    %107 = vector.broadcast %105 : vector<2x1x8xf32> to vector<2x8x8xf32>
    %108 = arith.addf %106, %107 : vector<2x8x8xf32>
    %cst_22 = arith.constant dense<0xFF800000> : vector<2x8xf32>
    %109 = vector.multi_reduction <maximumf>, %108, %cst_22 [2] : vector<2x8x8xf32> to vector<2x8xf32>
    %110 = vector.shape_cast %109 : vector<2x8xf32> to vector<2x8x1xf32>
    %111 = vector.broadcast %110 : vector<2x8x1xf32> to vector<2x8x8xf32>
    %112 = arith.subf %108, %111 : vector<2x8x8xf32>
    %113 = math.exp %112 : vector<2x8x8xf32>
    %cst_23 = arith.constant dense<0.000000e+00> : vector<2x8xf32>
    %114 = vector.multi_reduction <add>, %113, %cst_23 [2] : vector<2x8x8xf32> to vector<2x8xf32>
    %115 = math.log %114 : vector<2x8xf32>
    %116 = arith.addf %109, %115 : vector<2x8xf32>
    %117 = vector.extract_strided_slice %0 {offsets = [0, 6, 0], sizes = [2, 1, 8], strides = [1, 1, 1]} : vector<2x8x8xf32> to vector<2x1x8xf32>
    %118 = vector.shape_cast %117 : vector<2x1x8xf32> to vector<2x8xf32>
    %119 = arith.addf %116, %118 : vector<2x8xf32>
    %120 = vector.shape_cast %119 : vector<2x8xf32> to vector<2x1x8xf32>
    %121 = vector.broadcast %11 : vector<1x8x8xf32> to vector<2x8x8xf32>
    %122 = vector.broadcast %120 : vector<2x1x8xf32> to vector<2x8x8xf32>
    %123 = arith.addf %121, %122 : vector<2x8x8xf32>
    %cst_24 = arith.constant dense<0xFF800000> : vector<2x8xf32>
    %124 = vector.multi_reduction <maximumf>, %123, %cst_24 [2] : vector<2x8x8xf32> to vector<2x8xf32>
    %125 = vector.shape_cast %124 : vector<2x8xf32> to vector<2x8x1xf32>
    %126 = vector.broadcast %125 : vector<2x8x1xf32> to vector<2x8x8xf32>
    %127 = arith.subf %123, %126 : vector<2x8x8xf32>
    %128 = math.exp %127 : vector<2x8x8xf32>
    %cst_25 = arith.constant dense<0.000000e+00> : vector<2x8xf32>
    %129 = vector.multi_reduction <add>, %128, %cst_25 [2] : vector<2x8x8xf32> to vector<2x8xf32>
    %130 = math.log %129 : vector<2x8xf32>
    %131 = arith.addf %124, %130 : vector<2x8xf32>
    %132 = vector.extract_strided_slice %0 {offsets = [0, 7, 0], sizes = [2, 1, 8], strides = [1, 1, 1]} : vector<2x8x8xf32> to vector<2x1x8xf32>
    %133 = vector.shape_cast %132 : vector<2x1x8xf32> to vector<2x8xf32>
    %134 = arith.addf %131, %133 : vector<2x8xf32>
    %c0_26 = arith.constant 0 : index
    %c0_27 = arith.constant 0 : index
    %135 = vector.load %arg6[%c0_26, %c0_27] : memref<2x8xf32, #tpu.memory_space<vmem>>, vector<2x8xf32>
    tpu.vector_store %arg6[%c0_26, %c0_27], %134 {strides = array<i32>} : memref<2x8xf32, #tpu.memory_space<vmem>>, vector<2x8xf32>,
    %136 = vector.shape_cast %7 : vector<2x8x8xf32> to vector<16x8xf32>
    %cst_28 = arith.constant dense<0.000000e+00> : vector<16x8xf32>
    %137 = tpu.matmul %136, %1, %cst_28 {dimension_numbers = #tpu.dot_dimension_numbers<[1], [0], [0], [1], [0, 0, 1, 1], [], []>} : vector<16x8xf32>, vector<8x8xf32>, vector<16x8xf32> -> vector<16x8xf32>
    %138 = vector.shape_cast %137 : vector<16x8xf32> to vector<2x8x8xf32>
    %139 = vector.extract_strided_slice %138 {offsets = [0, 1, 0], sizes = [2, 7, 8], strides = [1, 1, 1]} : vector<2x8x8xf32> to vector<2x7x8xf32>
    %140 = vector.extract_strided_slice %7 {offsets = [0, 0, 0], sizes = [2, 7, 8], strides = [1, 1, 1]} : vector<2x8x8xf32> to vector<2x7x8xf32>
    %141 = arith.mulf %139, %140 : vector<2x7x8xf32>
    %cst_29 = arith.constant dense<0.000000e+00> : vector<2x7xf32>
    %142 = vector.multi_reduction <add>, %141, %cst_29 [2] : vector<2x7x8xf32> to vector<2x7xf32>
    %cst_30 = arith.constant dense<0.000000e+00> : vector<2xf32>
    %143 = vector.multi_reduction <add>, %142, %cst_30 [1] : vector<2x7xf32> to vector<2xf32>
    %144 = vector.shape_cast %143 : vector<2xf32> to vector<2x1xf32>
    %145 = vector.extract_strided_slice %138 {offsets = [0, 0, 0], sizes = [2, 1, 8], strides = [1, 1, 1]} : vector<2x8x8xf32> to vector<2x1x8xf32>
    %146 = vector.shape_cast %145 : vector<2x1x8xf32> to vector<2x8xf32>
    %c0_31 = arith.constant 0 : index
    %c0_32 = arith.constant 0 : index
    %147 = vector.load %arg8[%c0_31, %c0_32] : memref<2x8xf32, #tpu.memory_space<vmem>>, vector<2x8xf32>
    %148 = arith.mulf %146, %147 : vector<2x8xf32>
    %cst_33 = arith.constant dense<0.000000e+00> : vector<2xf32>
    %149 = vector.multi_reduction <add>, %148, %cst_33 [1] : vector<2x8xf32> to vector<2xf32>
    %150 = vector.shape_cast %149 : vector<2xf32> to vector<2x1xf32>
    %c0_i32_34 = arith.constant 0 : i32
    %151 = arith.cmpi sgt, %arg1, %c0_i32_34 : i32
    %cst_35 = arith.constant 0.000000e+00 : f32
    %152 = vector.broadcast %cst_35 : f32 to vector<2x1xf32>
    %153 = arith.select %151, %150, %152 : vector<2x1xf32>
    %154 = arith.mulf %0, %7 : vector<2x8x8xf32>
    %cst_36 = arith.constant dense<0.000000e+00> : vector<2x8xf32>
    %155 = vector.multi_reduction <add>, %154, %cst_36 [2] : vector<2x8x8xf32> to vector<2x8xf32>
    %156 = tpu.iota {dimensions = array<i32: 1>} : vector<2x8xi32>
    %c0_i32_37 = arith.constant 0 : i32
    %157 = arith.cmpi eq, %arg1, %c0_i32_37 : i32
    %c0_i32_38 = arith.constant 0 : i32
    %158 = vector.broadcast %c0_i32_38 : i32 to vector<2x8xi32>
    %159 = arith.cmpi eq, %156, %158 : vector<2x8xi32>
    %160 = vector.broadcast %157 : i1 to vector<2x8xi1>
    %161 = arith.andi %160, %159 : vector<2x8xi1>
    %cst_39 = arith.constant 0.000000e+00 : f32
    %162 = vector.broadcast %cst_39 : f32 to vector<2x8xf32>
    %163 = arith.select %161, %162, %155 : vector<2x8xi1>, vector<2x8xf32>
    %cst_40 = arith.constant dense<0.000000e+00> : vector<2xf32>
    %164 = vector.multi_reduction <add>, %163, %cst_40 [1] : vector<2x8xf32> to vector<2xf32>
    %165 = vector.shape_cast %164 : vector<2xf32> to vector<2x1xf32>
    %c0_41 = arith.constant 0 : index
    %c0_42 = arith.constant 0 : index
    %166 = vector.load %arg7[%c0_41, %c0_42] : memref<2x1xf32, #tpu.memory_space<vmem>>, vector<2x1xf32>
    %167 = arith.addf %166, %144 : vector<2x1xf32>
    %168 = arith.addf %167, %153 : vector<2x1xf32>
    %169 = arith.addf %168, %165 : vector<2x1xf32>
    %c0_43 = arith.constant 0 : index
    %c0_44 = arith.constant 0 : index
    %170 = vector.load %arg7[%c0_43, %c0_44] : memref<2x1xf32, #tpu.memory_space<vmem>>, vector<2x1xf32>
    tpu.vector_store %arg7[%c0_43, %c0_44], %169 {strides = array<i32>} : memref<2x1xf32, #tpu.memory_space<vmem>>, vector<2x1xf32>,
    %171 = vector.extract_strided_slice %7 {offsets = [0, 7, 0], sizes = [2, 1, 8], strides = [1, 1, 1]} : vector<2x8x8xf32> to vector<2x1x8xf32>
    %172 = vector.shape_cast %171 : vector<2x1x8xf32> to vector<2x8xf32>
    %c0_45 = arith.constant 0 : index
    %c0_46 = arith.constant 0 : index
    %173 = vector.load %arg8[%c0_45, %c0_46] : memref<2x8xf32, #tpu.memory_space<vmem>>, vector<2x8xf32>
    tpu.vector_store %arg8[%c0_45, %c0_46], %172 {strides = array<i32>} : memref<2x8xf32, #tpu.memory_space<vmem>>, vector<2x8xf32>,
    %c1_i32 = arith.constant 1 : i32
    %174 = arith.cmpi eq, %arg1, %c1_i32 : i32
    %175 = arith.extui %174 : i1 to i32
    %c0_i32_47 = arith.constant 0 : i32
    %176 = arith.cmpi ne, %175, %c0_i32_47 : i32
    scf.if %176 {
      %cst_48 = arith.constant dense<0xFF800000> : vector<2xf32>
      %177 = vector.multi_reduction <maximumf>, %134, %cst_48 [1] : vector<2x8xf32> to vector<2xf32>
      %178 = vector.shape_cast %177 : vector<2xf32> to vector<2x1xf32>
      %179 = vector.broadcast %178 : vector<2x1xf32> to vector<2x8xf32>
      %180 = arith.subf %134, %179 : vector<2x8xf32>
      %181 = math.exp %180 : vector<2x8xf32>
      %cst_49 = arith.constant dense<0.000000e+00> : vector<2xf32>
      %182 = vector.multi_reduction <add>, %181, %cst_49 [1] : vector<2x8xf32> to vector<2xf32>
      %183 = vector.shape_cast %182 : vector<2xf32> to vector<2x1xf32>
      %184 = math.log %183 : vector<2x1xf32>
      %185 = arith.addf %178, %184 : vector<2x1xf32>
      %186 = arith.subf %185, %169 : vector<2x1xf32>
      %c0_50 = arith.constant 0 : index
      %c0_51 = arith.constant 0 : index
      %187 = vector.load %arg5[%c0_50, %c0_51] : memref<2x1xf32, #tpu.memory_space<vmem>>, vector<2x1xf32>
      tpu.vector_store %arg5[%c0_50, %c0_51], %186 {strides = array<i32>} : memref<2x1xf32, #tpu.memory_space<vmem>>, vector<2x1xf32>,
    } else {
    }
    return
  }
  func.func @transform_0(%arg0: i32, %arg1: i32) -> (i32, i32, i32) {
    %c0_i32 = arith.constant 0 : i32
    %c0_i32_0 = arith.constant 0 : i32
    return %arg0, %arg1, %c0_i32 : i32, i32, i32
  }
  func.func @transform_1(%arg0: i32, %arg1: i32) -> (i32, i32) {
    %c0_i32 = arith.constant 0 : i32
    %c0_i32_0 = arith.constant 0 : i32
    %c0_i32_1 = arith.constant 0 : i32
    return %c0_i32, %c0_i32_0 : i32, i32
  }
  func.func @transform_2(%arg0: i32, %arg1: i32) -> (i32, i32, i32) {
    %c0_i32 = arith.constant 0 : i32
    %c0_i32_0 = arith.constant 0 : i32
    return %arg0, %arg1, %c0_i32 : i32, i32, i32
  }
  func.func @transform_3(%arg0: i32, %arg1: i32) -> (i32, i32) {
    %c0_i32 = arith.constant 0 : i32
    %c0_i32_0 = arith.constant 0 : i32
    return %arg0, %c0_i32 : i32, i32
  }
}

</mosaic_0001>

<llo_original>
// kernel: tpu_custom_call.1
$region0: #{tpu_custom_call.1}
  #allocation0 [shape = 'u32[]', space=smem, size = 0x4, offset = 0x4, fixed_abs, tag = 'smem constant byte address 0x4 - core index']
  #allocation1 [shape = 'u32[144,128]{1,0:T(1,128)}', space=vmem, size = 0x12000, scoped, tag = 'internal scratch']
  #allocation2 [shape = 'f32[2,8]{1,0:T(2,128)}', space=vmem, size = 0x400, scoped, tag = 'scratch operand']
  #allocation3 [shape = 'f32[2,1]{1,0:T(2,128)}', space=vmem, size = 0x400, scoped, tag = 'scratch operand']
  #allocation4 [shape = 'f32[2,8]{1,0:T(2,128)}', space=vmem, size = 0x400, scoped, tag = 'scratch operand']
  %s0 = inlined_call_operand.vmem [shape: f32[2,16,8], index: 0, kind: input, shape index: {}]
  %s1 = inlined_call_operand.vmem [shape: f32[8,8], index: 1, kind: input, shape index: {}]
  %s2 = inlined_call_operand.vmem [shape: s32[2,16,1], index: 2, kind: input, shape index: {}]
  %s3 = inlined_call_operand.vmem [shape: f32[2,1], index: 3, kind: output, shape index: {}]
  %s4 = sld [smem:[#allocation0]]
  $region129: #{tpu_custom_call.1} parent=0
    _
  %s6 = ssub.s32 1, %s4
  %s7 = scalar_select 0, %s6, %s4
  $region1: #{tpu_custom_call.1} parent=0
    #allocation5 [shape = 'u8[16384]{0}', space=vmem, size = 0x4000, scoped, tag = 'input window, operand 0']
    #allocation6 [shape = 'u8[16384]{0}', space=vmem, size = 0x4000, scoped, tag = 'input window, operand 2']
    loop: start=0, step=1, limit=4
    $region2: #{tpu_custom_call.1} parent=1 // loop_pre_header
      _
    $region3: #{tpu_custom_call.1} parent=1 // loop_header
      %s9 = sphi 0, %s13
      %p10 = scmp.ge.s32.totalorder %s9, 4
      %s16 = sphi 0, %s28
      %s17 = sphi 0, %s24
      %s18 = sphi 0, %s16
      %s19 = sphi 0, %s17
      %s20 = sphi 0, %s18
      %s21 = sphi 0, %s19
      %s33 = sphi 0, %s35
      %s36 = sphi 0, %s33
      %s37 = sphi 0, %s36
      %s53 = sphi 0, %s37
      %s57 = sphi 0, %s57
      %s59 = sphi 0, %s57
      %s60 = sphi 0, %s59
      %s74 = sphi 0, %s60
      %s82 = sphi 0, %s84
      %s85 = sphi 0, %s82
      %s86 = sphi 0, %s85
      %s102 = sphi 0, %s86
      %s108 = sphi 0, %s110
      %s111 = sphi 0, %s108
      %s112 = sphi 0, %s111
      %s128 = sphi 0, %s112
    $region4: #{tpu_custom_call.1} parent=1 // loop_header_branch
      %12 = sbr.rel (%p10) target = $region8
    $region5: #{tpu_custom_call.1} parent=1 // loop_body
      %s14 = ssub.s32 %s9, 1
      %s15 = ssub.s32 %s9, 2
      %s22 = sadd.s32 1, %s17
      %p23 = scmp.ge.s32.totalorder %s22, 2
      %s24 = scalar_select %p23, 0, %s22
      %s25 = sadd.s32 1, %s16
      %s26 = scalar_select %p23, %s25, %s16
      %p27 = scmp.ge.s32.totalorder %s26, 1
      %s28 = scalar_select %p27, 0, %s26
      %s29 = ssub.s32 %s16, %s28
      %s30 = ssub.s32 %s17, %s24
      %s31 = sor.u32 %s29, %s30
      %p32 = scmp.eq.s32.totalorder %s31, 0
      %s34 = sadd.s32 %s33, 1
      %s35 = scalar_select %p32, %s33, %s34
      %p38 = pneg %p32
      %p39 = scmp.eq.s32.totalorder %s9, 1
      %p40 = por %p38, %p39
      %p41 = scmp.ne.s32.totalorder %s33, %s36
      %p42 = scmp.eq.s32.totalorder %s9, 0
      %p43 = por %p41, %p42
      %p44 = scmp.ne.s32.totalorder %s33, %s36
      %p45 = scmp.eq.s32.totalorder %s14, 1
      %p46 = por %p44, %p45
      %p47 = scmp.ne.s32.totalorder %s36, %s37
      %p48 = scmp.eq.s32.totalorder %s14, 0
      %p49 = por %p47, %p48
      %p50 = scmp.ne.s32.totalorder %s36, %s37
      %p51 = scmp.eq.s32.totalorder %s15, 1
      %p52 = por %p50, %p51
      %p54 = scmp.ne.s32.totalorder %s37, %s53
      %p55 = scmp.eq.s32.totalorder %s15, 0
      %p56 = por %p54, %p55
      %s58 = sadd.s32 %s57, 1
      %p61 = scmp.eq.s32.totalorder %s9, 1
      %p62 = scmp.ne.s32.totalorder %s57, %s59
      %p63 = scmp.eq.s32.totalorder %s9, 0
      %p64 = por %p62, %p63
      %p65 = scmp.ne.s32.totalorder %s57, %s59
      %p66 = scmp.eq.s32.totalorder %s14, 1
      %p67 = por %p65, %p66
      %p68 = scmp.ne.s32.totalorder %s59, %s60
      %p69 = scmp.eq.s32.totalorder %s14, 0
      %p70 = por %p68, %p69
      %p71 = scmp.ne.s32.totalorder %s59, %s60
      %p72 = scmp.eq.s32.totalorder %s15, 1
      %p73 = por %p71, %p72
      %p75 = scmp.ne.s32.totalorder %s60, %s74
      %p76 = scmp.eq.s32.totalorder %s15, 0
      %p77 = por %p75, %p76
      %s78 = ssub.s32 %s16, %s28
      %s79 = ssub.s32 %s17, %s24
      %s80 = sor.u32 %s78, %s79
      %p81 = scmp.eq.s32.totalorder %s80, 0
      %s83 = sadd.s32 %s82, 1
      %s84 = scalar_select %p81, %s82, %s83
      %p87 = pneg %p81
      %p88 = scmp.eq.s32.totalorder %s9, 1
      %p89 = por %p87, %p88
      %p90 = scmp.ne.s32.totalorder %s82, %s85
      %p91 = scmp.eq.s32.totalorder %s9, 0
      %p92 = por %p90, %p91
      %p93 = scmp.ne.s32.totalorder %s82, %s85
      %p94 = scmp.eq.s32.totalorder %s14, 1
      %p95 = por %p93, %p94
      %p96 = scmp.ne.s32.totalorder %s85, %s86
      %p97 = scmp.eq.s32.totalorder %s14, 0
      %p98 = por %p96, %p97
      %p99 = scmp.ne.s32.totalorder %s85, %s86
      %p100 = scmp.eq.s32.totalorder %s15, 1
      %p101 = por %p99, %p100
      %p103 = scmp.ne.s32.totalorder %s86, %s102
      %p104 = scmp.eq.s32.totalorder %s15, 0
      %p105 = por %p103, %p104
      %s106 = ssub.s32 %s16, %s28
      %p107 = scmp.eq.s32.totalorder %s106, 0
      %s109 = sadd.s32 %s108, 1
      %s110 = scalar_select %p107, %s108, %s109
      %p113 = pneg %p107
      %p114 = scmp.eq.s32.totalorder %s9, 1
      %p115 = por %p113, %p114
      %p116 = scmp.ne.s32.totalorder %s108, %s111
      %p117 = scmp.eq.s32.totalorder %s9, 0
      %p118 = por %p116, %p117
      %p119 = scmp.ne.s32.totalorder %s108, %s111
      %p120 = scmp.eq.s32.totalorder %s14, 1
      %p121 = por %p119, %p120
      %p122 = scmp.ne.s32.totalorder %s111, %s112
      %p123 = scmp.eq.s32.totalorder %s14, 0
      %p124 = por %p122, %p123
      %p125 = scmp.ne.s32.totalorder %s111, %s112
      %p126 = scmp.eq.s32.totalorder %s15, 1
      %p127 = por %p125, %p126
      %p129 = scmp.ne.s32.totalorder %s112, %s128
      %p130 = scmp.eq.s32.totalorder %s15, 0
      %p131 = por %p129, %p130
      %p132 = scmp.le.s32.totalorder 1, %s9
      %p133 = scmp.lt.s32.totalorder %s9, 3
      %p134 = pnand %p132, %p133
      %p135 = pneg %p134
      // Predicated region
      $region9: #{tpu_custom_call.1} parent=5 // pred_check
        _
      $region10: #{tpu_custom_call.1} parent=5 // pred_check_branch
        %137 = sbr.rel (%p134) target = $region12
      $region11: #{tpu_custom_call.1} parent=5 // pred_region
        %s138 = ssub.s32 %s9, 1
        // Predicated region
        $region13: #{tpu_custom_call.1} parent=11 // pred_check
          %p139 = pneg %p70
        $region14: #{tpu_custom_call.1} parent=11 // pred_check_branch
          %141 = sbr.rel (%p139) target = $region16
        $region15: #{tpu_custom_call.1} parent=11 // pred_region
          _
        $region16: #{tpu_custom_call.1} parent=11 // pred_fallthru
          _
      $region12: #{tpu_custom_call.1} parent=5 // pred_fallthru
        _
      %p142 = scmp.lt.s32.totalorder %s9, 2
      // Predicated region
      $region17: #{tpu_custom_call.1} parent=5 // pred_check
        %p143 = pneg %p142
      $region18: #{tpu_custom_call.1} parent=5 // pred_check_branch
        %145 = sbr.rel (%p143) target = $region20
      $region19: #{tpu_custom_call.1} parent=5 // pred_region
        // Predicated region
        $region21: #{tpu_custom_call.1} parent=19 // pred_check
          %p146 = pneg %p43
        $region22: #{tpu_custom_call.1} parent=19 // pred_check_branch
          %148 = sbr.rel (%p146) target = $region24
        $region23: #{tpu_custom_call.1} parent=19 // pred_region
          %s149 = sand.u32 %s33, 1
          %s150 = sand.u32 %s33, 1
          %s151 = smul.addr %s150, 16
          %s152 = scalar_lea.vmem [#allocation5], %s151
          %s153 = smul.u32 2, %s16
          %s154 = smul.addr %s153, 2
          %s155 = sadd.s32 %s17, %s154
          %s156 = smul.addr %s155, 8
          %s157 = scalar_lea.vmem %s0, %s156
          // Predicated region
          $region25: #{tpu_custom_call.1} parent=23 // pred_check
            _
          $region26: #{tpu_custom_call.1} parent=23 // pred_check_branch
            %159 = sbr.rel (0) target = $region28
          $region27: #{tpu_custom_call.1} parent=23 // pred_region
            // Predicated region
            $region29: #{tpu_custom_call.1} parent=27 // pred_check
              _
            $region30: #{tpu_custom_call.1} parent=27 // pred_check_branch
              %161 = sbr.rel (0) target = $region32
            $region31: #{tpu_custom_call.1} parent=27 // pred_region
              // Predicated region
              $region44: #{tpu_custom_call.1} parent=31 // pred_check
                _
              $region45: #{tpu_custom_call.1} parent=31 // pred_check_branch
                %178 = sbr.rel (0) target = $region47
              $region46: #{tpu_custom_call.1} parent=31 // pred_region
                loop: start=0, step=1, limit=1
                $region48: #{tpu_custom_call.1} parent=46 // loop_pre_header
                  _
                $region49: #{tpu_custom_call.1} parent=46 // loop_header
                  %s180 = sphi 0, %s184
                  %p181 = scmp.ge.s32.totalorder %s180, 1
                  %s185 = sphi %s157, %s157
                  %s186 = sphi %s152, %s152
                $region50: #{tpu_custom_call.1} parent=46 // loop_header_branch
                  %183 = sbr.rel (%p181) target = $region54
                $region51: #{tpu_custom_call.1} parent=46 // loop_body
                  %v187 = vld [vmem:[%s185] sm:$0xff]
                  %188 = vst [vmem:[%s186] sm:$0xff] %v187
                  %v189 = vld [vmem:[%s185 + $0x10] sm:$0xff]
                  %190 = vst [vmem:[%s186 + $0x8] sm:$0xff] %v189
                $region52: #{tpu_custom_call.1} parent=46 // loop_footer
                  %s184 = sadd.s32 1, %s180
                $region53: #{tpu_custom_call.1} parent=46 // loop_footer_branch
                  %179 = sbr.rel target = $region49
                $region54: #{tpu_custom_call.1} parent=46 // loop_exit
                  _
              $region47: #{tpu_custom_call.1} parent=31 // pred_fallthru
                _
              // Predicated region
              $region55: #{tpu_custom_call.1} parent=31 // pred_check
                _
              $region56: #{tpu_custom_call.1} parent=31 // pred_check_branch
                %192 = sbr.rel target = $region58
              $region57: #{tpu_custom_call.1} parent=31 // pred_region
                _
              $region58: #{tpu_custom_call.1} parent=31 // pred_fallthru
                _
            $region32: #{tpu_custom_call.1} parent=27 // pred_fallthru
              _
            // Predicated region
            $region33: #{tpu_custom_call.1} parent=27 // pred_check
              _
            $region34: #{tpu_custom_call.1} parent=27 // pred_check_branch
              %163 = sbr.rel target = $region36
            $region35: #{tpu_custom_call.1} parent=27 // pred_region
              loop: start=0, step=1, limit=1
              $region37: #{tpu_custom_call.1} parent=35 // loop_pre_header
                _
              $region38: #{tpu_custom_call.1} parent=35 // loop_header
                %s166 = sphi 0, %s170
                %p167 = scmp.ge.s32.totalorder %s166, 1
                %s171 = sphi %s157, %s157
                %s172 = sphi %s152, %s152
              $region39: #{tpu_custom_call.1} parent=35 // loop_header_branch
                %169 = sbr.rel (%p167) target = $region43
              $region40: #{tpu_custom_call.1} parent=35 // loop_body
                %v173 = vld [vmem:[%s171] sm:$0xff]
                %174 = vst [vmem:[%s172] sm:$0xff] %v173
                %v175 = vld [vmem:[%s171 + $0x10] sm:$0xff]
                %176 = vst [vmem:[%s172 + $0x8] sm:$0xff] %v175
              $region41: #{tpu_custom_call.1} parent=35 // loop_footer
                %s170 = sadd.s32 1, %s166
              $region42: #{tpu_custom_call.1} parent=35 // loop_footer_branch
                %165 = sbr.rel target = $region38
              $region43: #{tpu_custom_call.1} parent=35 // loop_exit
                _
            $region36: #{tpu_custom_call.1} parent=27 // pred_fallthru
              _
          $region28: #{tpu_custom_call.1} parent=23 // pred_fallthru
            _
          %193 = vnop
        $region24: #{tpu_custom_call.1} parent=19 // pred_fallthru
          _
        // Predicated region
        $region59: #{tpu_custom_call.1} parent=19 // pred_check
          %p194 = pneg %p92
        $region60: #{tpu_custom_call.1} parent=19 // pred_check_branch
          %196 = sbr.rel (%p194) target = $region62
        $region61: #{tpu_custom_call.1} parent=19 // pred_region
          %s197 = sand.u32 %s82, 1
          %s198 = sand.u32 %s82, 1
          %s199 = smul.addr %s198, 16
          %s200 = scalar_lea.vmem [#allocation6], %s199
          %s201 = smul.u32 2, %s16
          %s202 = smul.addr %s201, 2
          %s203 = sadd.s32 %s17, %s202
          %s204 = smul.addr %s203, 8
          %s205 = scalar_lea.vmem %s2, %s204
          // Predicated region
          $region63: #{tpu_custom_call.1} parent=61 // pred_check
            _
          $region64: #{tpu_custom_call.1} parent=61 // pred_check_branch
            %207 = sbr.rel (0) target = $region66
          $region65: #{tpu_custom_call.1} parent=61 // pred_region
            // Predicated region
            $region67: #{tpu_custom_call.1} parent=65 // pred_check
              _
            $region68: #{tpu_custom_call.1} parent=65 // pred_check_branch
              %209 = sbr.rel (0) target = $region70
            $region69: #{tpu_custom_call.1} parent=65 // pred_region
              // Predicated region
              $region82: #{tpu_custom_call.1} parent=69 // pred_check
                _
              $region83: #{tpu_custom_call.1} parent=69 // pred_check_branch
                %226 = sbr.rel (0) target = $region85
              $region84: #{tpu_custom_call.1} parent=69 // pred_region
                loop: start=0, step=1, limit=1
                $region86: #{tpu_custom_call.1} parent=84 // loop_pre_header
                  _
                $region87: #{tpu_custom_call.1} parent=84 // loop_header
                  %s228 = sphi 0, %s232
                  %p229 = scmp.ge.s32.totalorder %s228, 1
                  %s233 = sphi %s205, %s205
                  %s234 = sphi %s200, %s200
                $region88: #{tpu_custom_call.1} parent=84 // loop_header_branch
                  %231 = sbr.rel (%p229) target = $region92
                $region89: #{tpu_custom_call.1} parent=84 // loop_body
                  %v235 = vld [vmem:[%s233] sm:$0xff]
                  %236 = vst [vmem:[%s234] sm:$0xff] %v235
                  %v237 = vld [vmem:[%s233 + $0x10] sm:$0xff]
                  %238 = vst [vmem:[%s234 + $0x8] sm:$0xff] %v237
                $region90: #{tpu_custom_call.1} parent=84 // loop_footer
                  %s232 = sadd.s32 1, %s228
                $region91: #{tpu_custom_call.1} parent=84 // loop_footer_branch
                  %227 = sbr.rel target = $region87
                $region92: #{tpu_custom_call.1} parent=84 // loop_exit
                  _
              $region85: #{tpu_custom_call.1} parent=69 // pred_fallthru
                _
              // Predicated region
              $region93: #{tpu_custom_call.1} parent=69 // pred_check
                _
              $region94: #{tpu_custom_call.1} parent=69 // pred_check_branch
                %240 = sbr.rel target = $region96
              $region95: #{tpu_custom_call.1} parent=69 // pred_region
                _
              $region96: #{tpu_custom_call.1} parent=69 // pred_fallthru
                _
            $region70: #{tpu_custom_call.1} parent=65 // pred_fallthru
              _
            // Predicated region
            $region71: #{tpu_custom_call.1} parent=65 // pred_check
              _
            $region72: #{tpu_custom_call.1} parent=65 // pred_check_branch
              %211 = sbr.rel target = $region74
            $region73: #{tpu_custom_call.1} parent=65 // pred_region
              loop: start=0, step=1, limit=1
              $region75: #{tpu_custom_call.1} parent=73 // loop_pre_header
                _
              $region76: #{tpu_custom_call.1} parent=73 // loop_header
                %s214 = sphi 0, %s218
                %p215 = scmp.ge.s32.totalorder %s214, 1
                %s219 = sphi %s205, %s205
                %s220 = sphi %s200, %s200
              $region77: #{tpu_custom_call.1} parent=73 // loop_header_branch
                %217 = sbr.rel (%p215) target = $region81
              $region78: #{tpu_custom_call.1} parent=73 // loop_body
                %v221 = vld [vmem:[%s219] sm:$0xff]
                %222 = vst [vmem:[%s220] sm:$0xff] %v221
                %v223 = vld [vmem:[%s219 + $0x10] sm:$0xff]
                %224 = vst [vmem:[%s220 + $0x8] sm:$0xff] %v223
              $region79: #{tpu_custom_call.1} parent=73 // loop_footer
                %s218 = sadd.s32 1, %s214
              $region80: #{tpu_custom_call.1} parent=73 // loop_footer_branch
                %213 = sbr.rel target = $region76
              $region81: #{tpu_custom_call.1} parent=73 // loop_exit
                _
            $region74: #{tpu_custom_call.1} parent=65 // pred_fallthru
              _
          $region66: #{tpu_custom_call.1} parent=61 // pred_fallthru
            _
          %241 = vnop
        $region62: #{tpu_custom_call.1} parent=19 // pred_fallthru
          _
      $region20: #{tpu_custom_call.1} parent=5 // pred_fallthru
        _
      %p242 = scmp.le.s32.totalorder 1, %s9
      %p243 = scmp.lt.s32.totalorder %s9, 3
      %p244 = pnand %p242, %p243
      %p245 = pneg %p244
      // Predicated region
      $region97: #{tpu_custom_call.1} parent=5 // pred_check
        _
      $region98: #{tpu_custom_call.1} parent=5 // pred_check_branch
        %247 = sbr.rel (%p244) target = $region100
      $region99: #{tpu_custom_call.1} parent=5 // pred_region
        %s248 = ssub.s32 %s9, 1
        %s249 = sand.u32 %s36, 1
        %s250 = sand.u32 %s36, 1
        %s251 = smul.addr %s250, 16
        %s252 = scalar_lea.vmem [#allocation5], %s251
        // Predicated region
        $region101: #{tpu_custom_call.1} parent=99 // pred_check
          %p253 = pneg %p49
        $region102: #{tpu_custom_call.1} parent=99 // pred_check_branch
          %255 = sbr.rel (%p253) target = $region104
        $region103: #{tpu_custom_call.1} parent=99 // pred_region
          _
        $region104: #{tpu_custom_call.1} parent=99 // pred_fallthru
          _
        %s256 = sand.u32 %s85, 1
        %s257 = sand.u32 %s85, 1
        %s258 = smul.addr %s257, 16
        %s259 = scalar_lea.vmem [#allocation6], %s258
        // Predicated region
        $region105: #{tpu_custom_call.1} parent=99 // pred_check
          %p260 = pneg %p98
        $region106: #{tpu_custom_call.1} parent=99 // pred_check_branch
          %262 = sbr.rel (%p260) target = $region108
        $region107: #{tpu_custom_call.1} parent=99 // pred_region
          _
        $region108: #{tpu_custom_call.1} parent=99 // pred_fallthru
          _
        %s263 = sand.u32 %s36, 1
        %s264 = sand.u32 %s36, 1
        %s265 = smul.addr %s264, 16
        %s266 = scalar_lea.vmem [#allocation5], %s265
        %p267 = pneg %p49
        %p268 = pneg %p46
        %p269 = pneg %p70
        %p270 = pneg %p67
        %s271 = sand.u32 %s85, 1
        %s272 = sand.u32 %s85, 1
        %s273 = smul.addr %s272, 16
        %s274 = scalar_lea.vmem [#allocation6], %s273
        %p275 = pneg %p98
        %p276 = pneg %p95
        %p277 = pneg %p124
        %p278 = pneg %p121
        %p279 = scmp.lt.s32.totalorder %s18, 0
        %s280 = scalar_select %p279, %s18, 0
        %s281 = smul.addr %s280, 2
        %s282 = scalar_lea.vmem %s3, %s281
        %s283 = smul.u32 2, %s18
        %s284 = smul.u32 2, %s18
        %p285 = scmp.lt.s32.totalorder %s18, 0
        %s286 = scalar_select %p285, %s18, 0
        %s287 = smul.addr %s286, 2
        %s288 = scalar_lea.vmem %s3, %s287
        %v289 = vld [vmem:[%s252] sm:$0xff]
        %v290 = vld [vmem:[%s252 + $0x8] sm:$0xff]
        %v291 = vld [vmem:[%s1] sm:$0xff]
        %v292 = vld [vmem:[%s259] sm:$0xff]
        %v293 = vld [vmem:[%s259 + $0x8] sm:$0xff]
        %v294 = vlaneseq
        %v295 = vand.u32 %v294, 127
        %296 = vset.pattern.permute.xlu0 0
        %297 = vperm.xlu0 %296, %v292
        %v298 = vpop.permute.xlu0 %297
        %299 = vset.pattern.permute.xlu0 0
        %300 = vperm.xlu0 %299, %v293
        %v301 = vpop.permute.xlu0 %300
        %vm302 = vcmp.eq.s32.totalorder %v298, %v295
        %vm303 = vcmp.eq.s32.totalorder %v301, %v295
        %v304 = vsel %vm302, 1, 0
        %v305 = vsel %vm303, 1, 0
        %v306 = vcvt.s32.f32 %v304
        %v307 = vcvt.s32.f32 %v305
        %p308 = scmp.eq.s32.totalorder %s19, 0
        // Predicated region
        $region109: #{tpu_custom_call.1} parent=99 // pred_check
          %p309 = pneg %p308
        $region110: #{tpu_custom_call.1} parent=99 // pred_check_branch
          %311 = sbr.rel (%p309) target = $region112
        $region111: #{tpu_custom_call.1} parent=99 // pred_region
          %vm312 = vcmp.eq.s32.totalorder %v295, 0
          %v313 = vsel %vm312, 0.0, -10000.0
          %vm314 = vcmask 58368
          %315 = vst.msk [vmem:[#allocation2] sm:$0x3] %vm314, %v313
          %vm316 = vcmask 1024
          %317 = vst.msk [vmem:[#allocation3] sm:$0x3] %vm316, 0.0
          %318 = vst.msk [vmem:[#allocation4] sm:$0x3] %vm314, 0.0
        $region112: #{tpu_custom_call.1} parent=99 // pred_fallthru
          _
        %v319 = vld [vmem:[#allocation2] sm:$0x3]
        %v322 = vunpack.c.l.s4 1966171168
        %v323 = vunpack.c.0.s8 %v322
        %v324 = vlaneseq
        %v325 = vshrl.u32 %v324, 7
        %v326 = vsub.s32 %v323, %v325
        %v327 = vrot.slane %v319, %v326
        %v328 = vcombine.high %v327, %v327
        %v330 = vunpack.c.l.s4 1966171168
        %v331 = vunpack.c.0.s8 %v330
        %v332 = vlaneseq
        %v333 = vshrl.u32 %v332, 7
        %v334 = vsub.s32 %v331, %v333
        %v335 = vrot.slane %v327, %v334
        %v337 = vunpack.c.l.s4 1966171168
        %v338 = vunpack.c.0.s8 %v337
        %v339 = vlaneseq
        %v340 = vshrl.u32 %v339, 7
        %v341 = vsub.s32 %v338, %v340
        %v342 = vrot.slane %v328, %v341
        %v343 = vlaneseq
        %v344 = vshrl.u32 %v343, 7
        %v345 = vsub.s32 0, %v344
        %v346 = vrot.slane %v335, %v345
        %v347 = vlaneseq
        %v348 = vshrl.u32 %v347, 7
        %v349 = vsub.s32 0, %v348
        %v350 = vrot.slane %v342, %v349
        %v353 = vadd.f32 %v291, %v346
        %v354 = vadd.f32 %v291, %v350
        %vm355 = vcmask 64512
        %v356 = vsel %vm355, %v353, -inf
        %357 = vmax.xlane.f32.xlu0 %v356
        %v358 = vpop.xlane.xlu0 %357
        %v359 = vsel %vm355, %v354, -inf
        %360 = vmax.xlane.f32.xlu0 %v359
        %v361 = vpop.xlane.xlu0 %360
        %v362 = vsub.f32 %v353, %v358
        %v363 = vsub.f32 %v354, %v361
        %v364 = vmul.f32 %v362, 1.442695
        %v365 = vpow.pop %v364
        %v366 = vmul.f32 %v363, 1.442695
        %v367 = vpow.pop %v366
        %v368 = vsel %vm355, %v365, 0.0
        %369 = vadd.xlane.f32.xlu0 %v368
        %v370 = vpop.xlane.xlu0 %369
        %v371 = vsel %vm355, %v367, 0.0
        %372 = vadd.xlane.f32.xlu0 %v371
        %v373 = vpop.xlane.xlu0 %372
        %v374 = vlog2.pop %v370
        %v375 = vmul.f32 %v374, 0.6931472
        %v376 = vlog2.pop %v373
        %v377 = vmul.f32 %v376, 0.6931472
        %v378 = vadd.f32 %v358, %v375
        %v379 = vadd.f32 %v361, %v377
        %v382 = vlaneseq
        %v383 = vshrl.u32 %v382, 7
        %v384 = vsub.s32 0, %v383
        %v385 = vrot.slane %v289, %v384
        %387 = vbcast.lane.b32.xlu0 %v385, 256
        %v388 = vpop.permute.xlu0 %387
        %v389 = vlaneseq
        %v390 = vshrl.u32 %v389, 7
        %v391 = vsub.s32 0, %v390
        %v392 = vrot.slane %v290, %v391
        %394 = vbcast.lane.b32.xlu0 %v392, 256
        %v395 = vpop.permute.xlu0 %394
        %v398 = vadd.f32 %v378, %v388
        %v399 = vadd.f32 %v379, %v395
        %p400 = scmp.gt.s32.totalorder %s19, 0
        %s401 = scalar_select %p400, 1, 0
        %v402 = vstv %s401
        %vm403 = vcmp.eq.s32.totalorder %v402, 1
        %v404 = vlaneseq
        %v405 = vshrl.u32 %v404, 7
        %v406 = vsub.s32 0, %v405
        %v407 = vrot.slane %v319, %v406
        %409 = vbcast.lane.b32.xlu0 %v407, 256
        %v410 = vpop.permute.xlu0 %409
        %v411 = vlaneseq
        %v412 = vshrl.u32 %v411, 7
        %v413 = vsub.s32 1, %v412
        %v414 = vrot.slane %v319, %v413
        %416 = vbcast.lane.b32.xlu0 %v414, 256
        %v417 = vpop.permute.xlu0 %416
        %v420 = vsel %vm403, %v398, %v410
        %v421 = vsel %vm403, %v399, %v417
        %424 = vset.pattern.permute.xlu0 0
        %425 = vperm.xlu0 %424, %v420
        %v426 = vpop.permute.xlu0 %425
        %427 = vset.pattern.permute.xlu0 0
        %428 = vperm.xlu0 %427, %v421
        %v429 = vpop.permute.xlu0 %428
        %v430 = vlaneseq
        %v431 = vshrl.u32 %v430, 7
        %v432 = vsub.s32 %v295, %v431
        %v433 = vrot.slane %v426, %v432
        %v434 = vlaneseq
        %v435 = vshrl.u32 %v434, 7
        %v436 = vsub.s32 %v295, %v435
        %v437 = vrot.slane %v429, %v436
        %vm438 = vcmask 1041409
        %vm439 = vcmask 1042434
        %v440 = vsel %vm439, %v433, %v433
        %vm441 = vcmask 1043459
        %v442 = vsel %vm441, %v433, %v440
        %vm443 = vcmask 1044484
        %v444 = vsel %vm443, %v433, %v442
        %vm445 = vcmask 1045509
        %v446 = vsel %vm445, %v433, %v444
        %vm447 = vcmask 1046534
        %v448 = vsel %vm447, %v433, %v446
        %vm449 = vcmask 1047559
        %v450 = vsel %vm449, %v433, %v448
        %v451 = vsel %vm439, %v437, %v437
        %v452 = vsel %vm441, %v437, %v451
        %v453 = vsel %vm443, %v437, %v452
        %v454 = vsel %vm445, %v437, %v453
        %v455 = vsel %vm447, %v437, %v454
        %v456 = vsel %vm449, %v437, %v455
        %v459 = vadd.f32 %v291, %v450
        %v460 = vadd.f32 %v291, %v456
        %v461 = vsel %vm355, %v459, -inf
        %462 = vmax.xlane.f32.xlu0 %v461
        %v463 = vpop.xlane.xlu0 %462
        %v464 = vsel %vm355, %v460, -inf
        %465 = vmax.xlane.f32.xlu0 %v464
        %v466 = vpop.xlane.xlu0 %465
        %v467 = vsub.f32 %v459, %v463
        %v468 = vsub.f32 %v460, %v466
        %v469 = vmul.f32 %v467, 1.442695
        %v470 = vpow.pop %v469
        %v471 = vmul.f32 %v468, 1.442695
        %v472 = vpow.pop %v471
        %v473 = vsel %vm355, %v470, 0.0
        %474 = vadd.xlane.f32.xlu0 %v473
        %v475 = vpop.xlane.xlu0 %474
        %v476 = vsel %vm355, %v472, 0.0
        %477 = vadd.xlane.f32.xlu0 %v476
        %v478 = vpop.xlane.xlu0 %477
        %v479 = vlog2.pop %v475
        %v480 = vmul.f32 %v479, 0.6931472
        %v481 = vlog2.pop %v478
        %v482 = vmul.f32 %v481, 0.6931472
        %v483 = vadd.f32 %v463, %v480
        %v484 = vadd.f32 %v466, %v482
        %v485 = vlaneseq
        %v486 = vshrl.u32 %v485, 7
        %v487 = vsub.s32 1, %v486
        %v488 = vrot.slane %v289, %v487
        %490 = vbcast.lane.b32.xlu0 %v488, 256
        %v491 = vpop.permute.xlu0 %490
        %v492 = vlaneseq
        %v493 = vshrl.u32 %v492, 7
        %v494 = vsub.s32 1, %v493
        %v495 = vrot.slane %v290, %v494
        %497 = vbcast.lane.b32.xlu0 %v495, 256
        %v498 = vpop.permute.xlu0 %497
        %v501 = vadd.f32 %v483, %v491
        %v502 = vadd.f32 %v484, %v498
        %505 = vset.pattern.permute.xlu0 0
        %506 = vperm.xlu0 %505, %v501
        %v507 = vpop.permute.xlu0 %506
        %508 = vset.pattern.permute.xlu0 0
        %509 = vperm.xlu0 %508, %v502
        %v510 = vpop.permute.xlu0 %509
        %v511 = vlaneseq
        %v512 = vshrl.u32 %v511, 7
        %v513 = vsub.s32 %v295, %v512
        %v514 = vrot.slane %v507, %v513
        %v515 = vlaneseq
        %v516 = vshrl.u32 %v515, 7
        %v517 = vsub.s32 %v295, %v516
        %v518 = vrot.slane %v510, %v517
        %v519 = vsel %vm439, %v514, %v514
        %v520 = vsel %vm441, %v514, %v519
        %v521 = vsel %vm443, %v514, %v520
        %v522 = vsel %vm445, %v514, %v521
        %v523 = vsel %vm447, %v514, %v522
        %v524 = vsel %vm449, %v514, %v523
        %v525 = vsel %vm439, %v518, %v518
        %v526 = vsel %vm441, %v518, %v525
        %v527 = vsel %vm443, %v518, %v526
        %v528 = vsel %vm445, %v518, %v527
        %v529 = vsel %vm447, %v518, %v528
        %v530 = vsel %vm449, %v518, %v529
        %v533 = vadd.f32 %v291, %v524
        %v534 = vadd.f32 %v291, %v530
        %v535 = vsel %vm355, %v533, -inf
        %536 = vmax.xlane.f32.xlu0 %v535
        %v537 = vpop.xlane.xlu0 %536
        %v538 = vsel %vm355, %v534, -inf
        %539 = vmax.xlane.f32.xlu0 %v538
        %v540 = vpop.xlane.xlu0 %539
        %v541 = vsub.f32 %v533, %v537
        %v542 = vsub.f32 %v534, %v540
        %v543 = vmul.f32 %v541, 1.442695
        %v544 = vpow.pop %v543
        %v545 = vmul.f32 %v542, 1.442695
        %v546 = vpow.pop %v545
        %v547 = vsel %vm355, %v544, 0.0
        %548 = vadd.xlane.f32.xlu0 %v547
        %v549 = vpop.xlane.xlu0 %548
        %v550 = vsel %vm355, %v546, 0.0
        %551 = vadd.xlane.f32.xlu0 %v550
        %v552 = vpop.xlane.xlu0 %551
        %v553 = vlog2.pop %v549
        %v554 = vmul.f32 %v553, 0.6931472
        %v555 = vlog2.pop %v552
        %v556 = vmul.f32 %v555, 0.6931472
        %v557 = vadd.f32 %v537, %v554
        %v558 = vadd.f32 %v540, %v556
        %v559 = vlaneseq
        %v560 = vshrl.u32 %v559, 7
        %v561 = vsub.s32 2, %v560
        %v562 = vrot.slane %v289, %v561
        %564 = vbcast.lane.b32.xlu0 %v562, 256
        %v565 = vpop.permute.xlu0 %564
        %v566 = vlaneseq
        %v567 = vshrl.u32 %v566, 7
        %v568 = vsub.s32 2, %v567
        %v569 = vrot.slane %v290, %v568
        %571 = vbcast.lane.b32.xlu0 %v569, 256
        %v572 = vpop.permute.xlu0 %571
        %v575 = vadd.f32 %v557, %v565
        %v576 = vadd.f32 %v558, %v572
        %579 = vset.pattern.permute.xlu0 0
        %580 = vperm.xlu0 %579, %v575
        %v581 = vpop.permute.xlu0 %580
        %582 = vset.pattern.permute.xlu0 0
        %583 = vperm.xlu0 %582, %v576
        %v584 = vpop.permute.xlu0 %583
        %v585 = vlaneseq
        %v586 = vshrl.u32 %v585, 7
        %v587 = vsub.s32 %v295, %v586
        %v588 = vrot.slane %v581, %v587
        %v589 = vlaneseq
        %v590 = vshrl.u32 %v589, 7
        %v591 = vsub.s32 %v295, %v590
        %v592 = vrot.slane %v584, %v591
        %v593 = vsel %vm439, %v588, %v588
        %v594 = vsel %vm441, %v588, %v593
        %v595 = vsel %vm443, %v588, %v594
        %v596 = vsel %vm445, %v588, %v595
        %v597 = vsel %vm447, %v588, %v596
        %v598 = vsel %vm449, %v588, %v597
        %v599 = vsel %vm439, %v592, %v592
        %v600 = vsel %vm441, %v592, %v599
        %v601 = vsel %vm443, %v592, %v600
        %v602 = vsel %vm445, %v592, %v601
        %v603 = vsel %vm447, %v592, %v602
        %v604 = vsel %vm449, %v592, %v603
        %v607 = vadd.f32 %v291, %v598
        %v608 = vadd.f32 %v291, %v604
        %v609 = vsel %vm355, %v607, -inf
        %610 = vmax.xlane.f32.xlu0 %v609
        %v611 = vpop.xlane.xlu0 %610
        %v612 = vsel %vm355, %v608, -inf
        %613 = vmax.xlane.f32.xlu0 %v612
        %v614 = vpop.xlane.xlu0 %613
        %v615 = vsub.f32 %v607, %v611
        %v616 = vsub.f32 %v608, %v614
        %v617 = vmul.f32 %v615, 1.442695
        %v618 = vpow.pop %v617
        %v619 = vmul.f32 %v616, 1.442695
        %v620 = vpow.pop %v619
        %v621 = vsel %vm355, %v618, 0.0
        %622 = vadd.xlane.f32.xlu0 %v621
        %v623 = vpop.xlane.xlu0 %622
        %v624 = vsel %vm355, %v620, 0.0
        %625 = vadd.xlane.f32.xlu0 %v624
        %v626 = vpop.xlane.xlu0 %625
        %v627 = vlog2.pop %v623
        %v628 = vmul.f32 %v627, 0.6931472
        %v629 = vlog2.pop %v626
        %v630 = vmul.f32 %v629, 0.6931472
        %v631 = vadd.f32 %v611, %v628
        %v632 = vadd.f32 %v614, %v630
        %v633 = vlaneseq
        %v634 = vshrl.u32 %v633, 7
        %v635 = vsub.s32 3, %v634
        %v636 = vrot.slane %v289, %v635
        %638 = vbcast.lane.b32.xlu0 %v636, 256
        %v639 = vpop.permute.xlu0 %638
        %v640 = vlaneseq
        %v641 = vshrl.u32 %v640, 7
        %v642 = vsub.s32 3, %v641
        %v643 = vrot.slane %v290, %v642
        %645 = vbcast.lane.b32.xlu0 %v643, 256
        %v646 = vpop.permute.xlu0 %645
        %v649 = vadd.f32 %v631, %v639
        %v650 = vadd.f32 %v632, %v646
        %653 = vset.pattern.permute.xlu0 0
        %654 = vperm.xlu0 %653, %v649
        %v655 = vpop.permute.xlu0 %654
        %656 = vset.pattern.permute.xlu0 0
        %657 = vperm.xlu0 %656, %v650
        %v658 = vpop.permute.xlu0 %657
        %v659 = vlaneseq
        %v660 = vshrl.u32 %v659, 7
        %v661 = vsub.s32 %v295, %v660
        %v662 = vrot.slane %v655, %v661
        %v663 = vlaneseq
        %v664 = vshrl.u32 %v663, 7
        %v665 = vsub.s32 %v295, %v664
        %v666 = vrot.slane %v658, %v665
        %v667 = vsel %vm439, %v662, %v662
        %v668 = vsel %vm441, %v662, %v667
        %v669 = vsel %vm443, %v662, %v668
        %v670 = vsel %vm445, %v662, %v669
        %v671 = vsel %vm447, %v662, %v670
        %v672 = vsel %vm449, %v662, %v671
        %v673 = vsel %vm439, %v666, %v666
        %v674 = vsel %vm441, %v666, %v673
        %v675 = vsel %vm443, %v666, %v674
        %v676 = vsel %vm445, %v666, %v675
        %v677 = vsel %vm447, %v666, %v676
        %v678 = vsel %vm449, %v666, %v677
        %v681 = vadd.f32 %v291, %v672
        %v682 = vadd.f32 %v291, %v678
        %v683 = vsel %vm355, %v681, -inf
        %684 = vmax.xlane.f32.xlu0 %v683
        %v685 = vpop.xlane.xlu0 %684
        %v686 = vsel %vm355, %v682, -inf
        %687 = vmax.xlane.f32.xlu0 %v686
        %v688 = vpop.xlane.xlu0 %687
        %v689 = vsub.f32 %v681, %v685
        %v690 = vsub.f32 %v682, %v688
        %v691 = vmul.f32 %v689, 1.442695
        %v692 = vpow.pop %v691
        %v693 = vmul.f32 %v690, 1.442695
        %v694 = vpow.pop %v693
        %v695 = vsel %vm355, %v692, 0.0
        %696 = vadd.xlane.f32.xlu0 %v695
        %v697 = vpop.xlane.xlu0 %696
        %v698 = vsel %vm355, %v694, 0.0
        %699 = vadd.xlane.f32.xlu0 %v698
        %v700 = vpop.xlane.xlu0 %699
        %v701 = vlog2.pop %v697
        %v702 = vmul.f32 %v701, 0.6931472
        %v703 = vlog2.pop %v700
        %v704 = vmul.f32 %v703, 0.6931472
        %v705 = vadd.f32 %v685, %v702
        %v706 = vadd.f32 %v688, %v704
        %v707 = vlaneseq
        %v708 = vshrl.u32 %v707, 7
        %v709 = vsub.s32 4, %v708
        %v710 = vrot.slane %v289, %v709
        %712 = vbcast.lane.b32.xlu0 %v710, 256
        %v713 = vpop.permute.xlu0 %712
        %v714 = vlaneseq
        %v715 = vshrl.u32 %v714, 7
        %v716 = vsub.s32 4, %v715
        %v717 = vrot.slane %v290, %v716
        %719 = vbcast.lane.b32.xlu0 %v717, 256
        %v720 = vpop.permute.xlu0 %719
        %v723 = vadd.f32 %v705, %v713
        %v724 = vadd.f32 %v706, %v720
        %727 = vset.pattern.permute.xlu0 0
        %728 = vperm.xlu0 %727, %v723
        %v729 = vpop.permute.xlu0 %728
        %730 = vset.pattern.permute.xlu0 0
        %731 = vperm.xlu0 %730, %v724
        %v732 = vpop.permute.xlu0 %731
        %v733 = vlaneseq
        %v734 = vshrl.u32 %v733, 7
        %v735 = vsub.s32 %v295, %v734
        %v736 = vrot.slane %v729, %v735
        %v737 = vlaneseq
        %v738 = vshrl.u32 %v737, 7
        %v739 = vsub.s32 %v295, %v738
        %v740 = vrot.slane %v732, %v739
        %v741 = vsel %vm439, %v736, %v736
        %v742 = vsel %vm441, %v736, %v741
        %v743 = vsel %vm443, %v736, %v742
        %v744 = vsel %vm445, %v736, %v743
        %v745 = vsel %vm447, %v736, %v744
        %v746 = vsel %vm449, %v736, %v745
        %v747 = vsel %vm439, %v740, %v740
        %v748 = vsel %vm441, %v740, %v747
        %v749 = vsel %vm443, %v740, %v748
        %v750 = vsel %vm445, %v740, %v749
        %v751 = vsel %vm447, %v740, %v750
        %v752 = vsel %vm449, %v740, %v751
        %v755 = vadd.f32 %v291, %v746
        %v756 = vadd.f32 %v291, %v752
        %v757 = vsel %vm355, %v755, -inf
        %758 = vmax.xlane.f32.xlu0 %v757
        %v759 = vpop.xlane.xlu0 %758
        %v760 = vsel %vm355, %v756, -inf
        %761 = vmax.xlane.f32.xlu0 %v760
        %v762 = vpop.xlane.xlu0 %761
        %v763 = vsub.f32 %v755, %v759
        %v764 = vsub.f32 %v756, %v762
        %v765 = vmul.f32 %v763, 1.442695
        %v766 = vpow.pop %v765
        %v767 = vmul.f32 %v764, 1.442695
        %v768 = vpow.pop %v767
        %v769 = vsel %vm355, %v766, 0.0
        %770 = vadd.xlane.f32.xlu0 %v769
        %v771 = vpop.xlane.xlu0 %770
        %v772 = vsel %vm355, %v768, 0.0
        %773 = vadd.xlane.f32.xlu0 %v772
        %v774 = vpop.xlane.xlu0 %773
        %v775 = vlog2.pop %v771
        %v776 = vmul.f32 %v775, 0.6931472
        %v777 = vlog2.pop %v774
        %v778 = vmul.f32 %v777, 0.6931472
        %v779 = vadd.f32 %v759, %v776
        %v780 = vadd.f32 %v762, %v778
        %v781 = vlaneseq
        %v782 = vshrl.u32 %v781, 7
        %v783 = vsub.s32 5, %v782
        %v784 = vrot.slane %v289, %v783
        %786 = vbcast.lane.b32.xlu0 %v784, 256
        %v787 = vpop.permute.xlu0 %786
        %v788 = vlaneseq
        %v789 = vshrl.u32 %v788, 7
        %v790 = vsub.s32 5, %v789
        %v791 = vrot.slane %v290, %v790
        %793 = vbcast.lane.b32.xlu0 %v791, 256
        %v794 = vpop.permute.xlu0 %793
        %v797 = vadd.f32 %v779, %v787
        %v798 = vadd.f32 %v780, %v794
        %801 = vset.pattern.permute.xlu0 0
        %802 = vperm.xlu0 %801, %v797
        %v803 = vpop.permute.xlu0 %802
        %804 = vset.pattern.permute.xlu0 0
        %805 = vperm.xlu0 %804, %v798
        %v806 = vpop.permute.xlu0 %805
        %v807 = vlaneseq
        %v808 = vshrl.u32 %v807, 7
        %v809 = vsub.s32 %v295, %v808
        %v810 = vrot.slane %v803, %v809
        %v811 = vlaneseq
        %v812 = vshrl.u32 %v811, 7
        %v813 = vsub.s32 %v295, %v812
        %v814 = vrot.slane %v806, %v813
        %v815 = vsel %vm439, %v810, %v810
        %v816 = vsel %vm441, %v810, %v815
        %v817 = vsel %vm443, %v810, %v816
        %v818 = vsel %vm445, %v810, %v817
        %v819 = vsel %vm447, %v810, %v818
        %v820 = vsel %vm449, %v810, %v819
        %v821 = vsel %vm439, %v814, %v814
        %v822 = vsel %vm441, %v814, %v821
        %v823 = vsel %vm443, %v814, %v822
        %v824 = vsel %vm445, %v814, %v823
        %v825 = vsel %vm447, %v814, %v824
        %v826 = vsel %vm449, %v814, %v825
        %v829 = vadd.f32 %v291, %v820
        %v830 = vadd.f32 %v291, %v826
        %v831 = vsel %vm355, %v829, -inf
        %832 = vmax.xlane.f32.xlu0 %v831
        %v833 = vpop.xlane.xlu0 %832
        %v834 = vsel %vm355, %v830, -inf
        %835 = vmax.xlane.f32.xlu0 %v834
        %v836 = vpop.xlane.xlu0 %835
        %v837 = vsub.f32 %v829, %v833
        %v838 = vsub.f32 %v830, %v836
        %v839 = vmul.f32 %v837, 1.442695
        %v840 = vpow.pop %v839
        %v841 = vmul.f32 %v838, 1.442695
        %v842 = vpow.pop %v841
        %v843 = vsel %vm355, %v840, 0.0
        %844 = vadd.xlane.f32.xlu0 %v843
        %v845 = vpop.xlane.xlu0 %844
        %v846 = vsel %vm355, %v842, 0.0
        %847 = vadd.xlane.f32.xlu0 %v846
        %v848 = vpop.xlane.xlu0 %847
        %v849 = vlog2.pop %v845
        %v850 = vmul.f32 %v849, 0.6931472
        %v851 = vlog2.pop %v848
        %v852 = vmul.f32 %v851, 0.6931472
        %v853 = vadd.f32 %v833, %v850
        %v854 = vadd.f32 %v836, %v852
        %v855 = vlaneseq
        %v856 = vshrl.u32 %v855, 7
        %v857 = vsub.s32 6, %v856
        %v858 = vrot.slane %v289, %v857
        %860 = vbcast.lane.b32.xlu0 %v858, 256
        %v861 = vpop.permute.xlu0 %860
        %v862 = vlaneseq
        %v863 = vshrl.u32 %v862, 7
        %v864 = vsub.s32 6, %v863
        %v865 = vrot.slane %v290, %v864
        %867 = vbcast.lane.b32.xlu0 %v865, 256
        %v868 = vpop.permute.xlu0 %867
        %v871 = vadd.f32 %v853, %v861
        %v872 = vadd.f32 %v854, %v868
        %875 = vset.pattern.permute.xlu0 0
        %876 = vperm.xlu0 %875, %v871
        %v877 = vpop.permute.xlu0 %876
        %878 = vset.pattern.permute.xlu0 0
        %879 = vperm.xlu0 %878, %v872
        %v880 = vpop.permute.xlu0 %879
        %v881 = vlaneseq
        %v882 = vshrl.u32 %v881, 7
        %v883 = vsub.s32 %v295, %v882
        %v884 = vrot.slane %v877, %v883
        %v885 = vlaneseq
        %v886 = vshrl.u32 %v885, 7
        %v887 = vsub.s32 %v295, %v886
        %v888 = vrot.slane %v880, %v887
        %v889 = vsel %vm439, %v884, %v884
        %v890 = vsel %vm441, %v884, %v889
        %v891 = vsel %vm443, %v884, %v890
        %v892 = vsel %vm445, %v884, %v891
        %v893 = vsel %vm447, %v884, %v892
        %v894 = vsel %vm449, %v884, %v893
        %v895 = vsel %vm439, %v888, %v888
        %v896 = vsel %vm441, %v888, %v895
        %v897 = vsel %vm443, %v888, %v896
        %v898 = vsel %vm445, %v888, %v897
        %v899 = vsel %vm447, %v888, %v898
        %v900 = vsel %vm449, %v888, %v899
        %v903 = vadd.f32 %v291, %v894
        %v904 = vadd.f32 %v291, %v900
        %v905 = vsel %vm355, %v903, -inf
        %906 = vmax.xlane.f32.xlu0 %v905
        %v907 = vpop.xlane.xlu0 %906
        %v908 = vsel %vm355, %v904, -inf
        %909 = vmax.xlane.f32.xlu0 %v908
        %v910 = vpop.xlane.xlu0 %909
        %v911 = vsub.f32 %v903, %v907
        %v912 = vsub.f32 %v904, %v910
        %v913 = vmul.f32 %v911, 1.442695
        %v914 = vpow.pop %v913
        %v915 = vmul.f32 %v912, 1.442695
        %v916 = vpow.pop %v915
        %v917 = vsel %vm355, %v914, 0.0
        %918 = vadd.xlane.f32.xlu0 %v917
        %v919 = vpop.xlane.xlu0 %918
        %v920 = vsel %vm355, %v916, 0.0
        %921 = vadd.xlane.f32.xlu0 %v920
        %v922 = vpop.xlane.xlu0 %921
        %v923 = vlog2.pop %v919
        %v924 = vmul.f32 %v923, 0.6931472
        %v925 = vlog2.pop %v922
        %v926 = vmul.f32 %v925, 0.6931472
        %v927 = vadd.f32 %v907, %v924
        %v928 = vadd.f32 %v910, %v926
        %v929 = vlaneseq
        %v930 = vshrl.u32 %v929, 7
        %v931 = vsub.s32 7, %v930
        %v932 = vrot.slane %v289, %v931
        %934 = vbcast.lane.b32.xlu0 %v932, 256
        %v935 = vpop.permute.xlu0 %934
        %v936 = vlaneseq
        %v937 = vshrl.u32 %v936, 7
        %v938 = vsub.s32 7, %v937
        %v939 = vrot.slane %v290, %v938
        %941 = vbcast.lane.b32.xlu0 %v939, 256
        %v942 = vpop.permute.xlu0 %941
        %v945 = vadd.f32 %v927, %v935
        %v946 = vadd.f32 %v928, %v942
        %949 = vset.pattern.permute.xlu0 0
        %950 = vperm.xlu0 %949, %v945
        %v951 = vpop.permute.xlu0 %950
        %952 = vset.pattern.permute.xlu0 0
        %953 = vperm.xlu0 %952, %v946
        %v954 = vpop.permute.xlu0 %953
        %v955 = vlaneseq
        %v956 = vshrl.u32 %v955, 7
        %v957 = vsub.s32 %v295, %v956
        %v958 = vrot.slane %v951, %v957
        %v959 = vlaneseq
        %v960 = vshrl.u32 %v959, 7
        %v961 = vsub.s32 %v295, %v960
        %v962 = vrot.slane %v954, %v961
        %v963 = vsel %vm438, %v962, %v958
        %vm965 = vcmask 58368
        %966 = vst.msk [vmem:[#allocation2] sm:$0x3] %vm965, %v963
        %v968 = vsel %vm355, %v306, 0
        %v971 = vsel %vm355, %v307, 0
        %973 = vmatprep.subr.mxu0 0.0
        %974 = vmatpush1.msra.mxu0 %v291
        %975 = vmatprep.subr.mxu0 0.0
        %976 = vmatpush1.msra.mxu0 0.0
        %977 = vmatprep.subr.mxu0 0.0
        %978 = vmatpush1.msra.mxu0 0.0
        %979 = vmatprep.subr.mxu0 0.0
        %980 = vmatpush1.msra.mxu0 0.0
        %981 = vmatprep.subr.mxu0 0.0
        %982 = vmatpush1.msra.mxu0 0.0
        %983 = vmatprep.subr.mxu0 0.0
        %984 = vmatpush1.msra.mxu0 0.0
        %985 = vmatprep.subr.mxu0 0.0
        %986 = vmatpush1.msra.mxu0 0.0
        %987 = vmatprep.subr.mxu0 0.0
        %988 = vmatpush1.msra.mxu0 0.0
        %989 = vmatprep.subr.mxu0 0.0
        %990 = vmatpush1.msra.mxu0 0.0
        %991 = vmatprep.subr.mxu0 0.0
        %992 = vmatpush1.msra.mxu0 0.0
        %993 = vmatprep.subr.mxu0 0.0
        %994 = vmatpush1.msra.mxu0 0.0
        %995 = vmatprep.subr.mxu0 0.0
        %996 = vmatpush1.msra.mxu0 0.0
        %997 = vmatprep.subr.mxu0 0.0
        %998 = vmatpush1.msra.mxu0 0.0
        %999 = vmatprep.subr.mxu0 0.0
        %1000 = vmatpush1.msra.mxu0 0.0
        %1001 = vmatprep.subr.mxu0 0.0
        %1002 = vmatpush1.msra.mxu0 0.0
        %1003 = vmatprep.subr.mxu0 0.0
        %1004 = vmatpush1.msra.mxu0 0.0
        %1005 = vmatprep.subr.mxu0 0.0
        %1006 = vmatpush1.msra.mxu0 0.0
        %1007 = vmatprep.subr.mxu0 0.0
        %1008 = vmatpush1.msra.mxu0 0.0
        %1009 = vmatprep.subr.mxu0 0.0
        %1010 = vmatpush1.msra.mxu0 0.0
        %1011 = vmatprep.subr.mxu0 0.0
        %1012 = vmatpush1.msra.mxu0 0.0
        %1013 = vmatprep.subr.mxu0 0.0
        %1014 = vmatpush1.msra.mxu0 0.0
        %1015 = vmatprep.subr.mxu0 0.0
        %1016 = vmatpush1.msra.mxu0 0.0
        %1017 = vmatprep.subr.mxu0 0.0
        %1018 = vmatpush1.msra.mxu0 0.0
        %1019 = vmatprep.subr.mxu0 0.0
        %1020 = vmatpush1.msra.mxu0 0.0
        %1021 = vmatprep.subr.mxu0 0.0
        %1022 = vmatpush1.msra.mxu0 0.0
        %1023 = vmatprep.subr.mxu0 0.0
        %1024 = vmatpush1.msra.mxu0 0.0
        %1025 = vmatprep.subr.mxu0 0.0
        %1026 = vmatpush1.msra.mxu0 0.0
        %1027 = vmatprep.subr.mxu0 0.0
        %1028 = vmatpush1.msra.mxu0 0.0
        %1029 = vmatprep.subr.mxu0 0.0
        %1030 = vmatpush1.msra.mxu0 0.0
        %1031 = vmatprep.subr.mxu0 0.0
        %1032 = vmatpush1.msra.mxu0 0.0
        %1033 = vmatprep.subr.mxu0 0.0
        %1034 = vmatpush1.msra.mxu0 0.0
        %1035 = vmatprep.subr.mxu0 0.0
        %1036 = vmatpush1.msra.mxu0 0.0
        %1037 = vmatprep.mubr.f32.mxu0 0.0
        %1038 = vmatmul.mubr.f32.gmra.mrb[0].mxu0 %v968
        %v1039 = vpop.f32.mrb[0].mxu0
        %v1040 = vadd.f32 0.0, %v1039
        %v1041 = vpop.f32.mrb[0].mxu0
        %1042 = vmatprep.mubr.f32.mxu0 0.0
        %1043 = vmatmul.mubr.f32.gmra.mrb[0].mxu0 %v971
        %v1044 = vpop.f32.mrb[0].mxu0
        %v1045 = vadd.f32 0.0, %v1044
        %v1046 = vpop.f32.mrb[0].mxu0
        %1047 = vdwg.mxu0
        %v1048 = vrot.slane %v306, 7
        %v1049 = vrot.slane %v307, 7
        %v1052 = vmul.f32 %v1040, %v1048
        %v1053 = vmul.f32 %v1045, %v1049
        %vm1054 = vcmask 64513
        %v1055 = vsel %vm1054, %v1052, 0.0
        %1056 = vadd.xlane.f32.xlu0 %v1055
        %v1057 = vpop.xlane.xlu0 %1056
        %v1058 = vsel %vm1054, %v1053, 0.0
        %1059 = vadd.xlane.f32.xlu0 %v1058
        %v1060 = vpop.xlane.xlu0 %1059
        %v1063 = vadd.s32 %v295, 1
        %v1064 = vlaneseq
        %v1065 = vshrl.u32 %v1064, 7
        %v1066 = vsub.s32 %v1063, %v1065
        %v1067 = vrot.slane %v1057, %v1066
        %v1068 = vlaneseq
        %v1069 = vshrl.u32 %v1068, 7
        %v1070 = vsub.s32 %v1063, %v1069
        %v1071 = vrot.slane %v1060, %v1070
        %v1072 = vsel %vm438, %v1071, %v1067
        %vm1074 = vcmask 50176
        %v1075 = vsel %vm1074, %v1072, 0.0
        %1076 = vadd.xlane.f32.xlu0 %v1075
        %v1077 = vpop.xlane.xlu0 %1076
        %v1078 = vld [vmem:[#allocation4] sm:$0x3]
        %v1080 = vrot.slane %v1078, 1
        %v1083 = vmul.f32 %v1040, %v1078
        %v1084 = vmul.f32 %v1045, %v1080
        %v1087 = vrot.slane %v1084, 7
        %v1088 = vsel %vm438, %v1087, %v1083
        %v1090 = vsel %vm965, %v1088, 0.0
        %1091 = vadd.xlane.f32.xlu0 %v1090
        %v1092 = vpop.xlane.xlu0 %1091
        %v1093 = vsel %vm403, %v1092, 0.0
        %v1094 = vmul.f32 %v289, %v306
        %v1095 = vmul.f32 %v290, %v307
        %v1096 = vsel %vm355, %v1094, 0.0
        %1097 = vadd.xlane.f32.xlu0 %v1096
        %v1098 = vpop.xlane.xlu0 %1097
        %v1099 = vsel %vm355, %v1095, 0.0
        %1100 = vadd.xlane.f32.xlu0 %v1099
        %v1101 = vpop.xlane.xlu0 %1100
        %vm1102 = vcmp.eq.s32.totalorder %v295, 0
        %s1103 = scalar_select %p308, 1, 0
        %v1104 = vstv %s1103
        %vm1105 = vcmp.eq.s32.totalorder %v1104, 1
        %vm1106 = vmand %vm1105, %vm1102
        %v1109 = vlaneseq
        %v1110 = vshrl.u32 %v1109, 7
        %v1111 = vsub.s32 %v295, %v1110
        %v1112 = vrot.slane %v1098, %v1111
        %v1113 = vlaneseq
        %v1114 = vshrl.u32 %v1113, 7
        %v1115 = vsub.s32 %v295, %v1114
        %v1116 = vrot.slane %v1101, %v1115
        %v1117 = vsel %vm438, %v1116, %v1112
        %v1119 = vsel %vm1106, 0.0, %v1117
        %v1120 = vsel %vm965, %v1119, 0.0
        %1121 = vadd.xlane.f32.xlu0 %v1120
        %v1122 = vpop.xlane.xlu0 %1121
        %v1123 = vld [vmem:[#allocation3] sm:$0x3]
        %v1124 = vadd.f32 %v1123, %v1077
        %v1125 = vadd.f32 %v1124, %v1093
        %v1126 = vadd.f32 %v1125, %v1122
        %vm1127 = vcmask 1024
        %1128 = vst.msk [vmem:[#allocation3] sm:$0x3] %vm1127, %v1126
        %vm1130 = vcmask 64519
        %1131 = vst.msk [vmem:[#allocation4 - $0x7] sm:$0x80] %vm1130, %v306
        %vm1132 = vcmask 57344
        %1133 = vst.msk [vmem:[#allocation4 + $0x1] sm:$0x1] %vm1132, %v1049
        %p1134 = scmp.eq.s32.totalorder %s19, 1
        // Predicated region
        $region113: #{tpu_custom_call.1} parent=99 // pred_check
          %p1135 = pneg %p1134
        $region114: #{tpu_custom_call.1} parent=99 // pred_check_branch
          %1137 = sbr.rel (%p1135) target = $region116
        $region115: #{tpu_custom_call.1} parent=99 // pred_region
          %v1138 = vsel %vm965, %v963, -inf
          %1139 = vmax.xlane.f32.xlu0 %v1138
          %v1140 = vpop.xlane.xlu0 %1139
          %v1142 = vlaneseq
          %v1143 = vshrl.u32 %v1142, 7
          %v1144 = vsub.s32 0, %v1143
          %v1145 = vrot.slane %v1140, %v1144
          %v1146 = vlaneseq
          %v1147 = vshrl.u32 %v1146, 7
          %v1148 = vsub.s32 1, %v1147
          %v1149 = vrot.slane %v1140, %v1148
          %v1152 = vsub.f32 %v945, %v1145
          %v1153 = vsub.f32 %v946, %v1149
          %v1154 = vmul.f32 %v1152, 1.442695
          %v1155 = vpow.pop %v1154
          %v1156 = vmul.f32 %v1153, 1.442695
          %v1157 = vpow.pop %v1156
          %1160 = vset.pattern.permute.xlu0 0
          %1161 = vperm.xlu0 %1160, %v1155
          %v1162 = vpop.permute.xlu0 %1161
          %1163 = vset.pattern.permute.xlu0 0
          %1164 = vperm.xlu0 %1163, %v1157
          %v1165 = vpop.permute.xlu0 %1164
          %v1166 = vlaneseq
          %v1167 = vshrl.u32 %v1166, 7
          %v1168 = vsub.s32 %v295, %v1167
          %v1169 = vrot.slane %v1162, %v1168
          %v1170 = vlaneseq
          %v1171 = vshrl.u32 %v1170, 7
          %v1172 = vsub.s32 %v295, %v1171
          %v1173 = vrot.slane %v1165, %v1172
          %v1174 = vsel %vm438, %v1173, %v1169
          %v1176 = vsel %vm965, %v1174, 0.0
          %1177 = vadd.xlane.f32.xlu0 %v1176
          %v1178 = vpop.xlane.xlu0 %1177
          %v1179 = vlog2.pop %v1178
          %v1180 = vmul.f32 %v1179, 0.6931472
          %v1181 = vadd.f32 %v1140, %v1180
          %v1182 = vsub.f32 %v1181, %v1126
          %1183 = vst.msk [vmem:[%s288] sm:$0x3] %vm1127, %v1182
        $region116: #{tpu_custom_call.1} parent=99 // pred_fallthru
          _
        %p1184 = scmp.lt.s32.totalorder %s18, 0
        %s1185 = scalar_select %p1184, %s18, 0
        %s1186 = smul.addr %s1185, 2
        %s1187 = scalar_lea.vmem %s3, %s1186
        // Predicated region
        $region117: #{tpu_custom_call.1} parent=99 // pred_check
          %p1188 = pneg %p121
        $region118: #{tpu_custom_call.1} parent=99 // pred_check_branch
          %1190 = sbr.rel (%p1188) target = $region120
        $region119: #{tpu_custom_call.1} parent=99 // pred_region
          _
        $region120: #{tpu_custom_call.1} parent=99 // pred_fallthru
          _
        // Predicated region
        $region121: #{tpu_custom_call.1} parent=99 // pred_check
          %p1191 = pneg %p121
        $region122: #{tpu_custom_call.1} parent=99 // pred_check_branch
          %1193 = sbr.rel (%p1191) target = $region124
        $region123: #{tpu_custom_call.1} parent=99 // pred_region
          %p1194 = scmp.lt.s32.totalorder %s18, 0
          %s1195 = scalar_select %p1194, %s18, 0
          %s1196 = smul.addr %s1195, 2
          %s1197 = scalar_lea.vmem %s3, %s1196
        $region124: #{tpu_custom_call.1} parent=99 // pred_fallthru
          _
      $region100: #{tpu_custom_call.1} parent=5 // pred_fallthru
        _
      %p1198 = scmp.le.s32.totalorder 2, %s9
      // Predicated region
      $region125: #{tpu_custom_call.1} parent=5 // pred_check
        %p1199 = pneg %p1198
      $region126: #{tpu_custom_call.1} parent=5 // pred_check_branch
        %1201 = sbr.rel (%p1199) target = $region128
      $region127: #{tpu_custom_call.1} parent=5 // pred_region
        %s1202 = ssub.s32 %s9, 2
      $region128: #{tpu_custom_call.1} parent=5 // pred_fallthru
        _
    $region6: #{tpu_custom_call.1} parent=1 // loop_footer
      %s13 = sadd.s32 1, %s9
    $region7: #{tpu_custom_call.1} parent=1 // loop_footer_branch
      %8 = sbr.rel target = $region3
    $region8: #{tpu_custom_call.1} parent=1 // loop_exit
      _

</llo_original>
